<compile_context>
chip_gen: v7x
topology: tpu7x:2x2x1
jax: 0.10.0
libtpu: 0.0.40
codegen_flags: <defaults>
</compile_context>

<pallas_src>
import functools

import jax
import jax.numpy as jnp
from jax import lax
from jax.experimental import pallas as pl
from jax.experimental.pallas import tpu as pltpu


def _parallel_attention_kernel(origin_ref, bert_ref, w1_ref, b1_ref,
                               w2_ref, b2_ref, out_ref, h_ref):
    # origin_ref: [Bb, T, C] bf16     bert_ref: [Bb, T, D] bf16
    # w1: [D, D] bf16   b1: [1, D] f32
    # w2: [D, Vt] bf16  b2: [1, Vt] f32
    # out_ref: [Bb, C, Vt] f32        h_ref (VMEM scratch): [Bb*T, D] bf16
    v_idx = pl.program_id(1)
    Bb, T, C = origin_ref.shape
    D = bert_ref.shape[2]

    # ---- first projection + tanh: computed once per batch block (v == 0),
    #      reused for every V tile via the persistent scratch -----------------
    @pl.when(v_idx == 0)
    def _():
        bert2d = bert_ref[...].reshape(Bb * T, D)                     # bf16
        # TODO(synk): Dropout(p=0.1) is modeled as the inference-mode identity.
        h = jnp.tanh(jnp.dot(bert2d, w1_ref[...],
                             preferred_element_type=jnp.float32)
                     + b1_ref[...])                                   # f32
        h_ref[...] = h.astype(h_ref.dtype)

    # ---- second projection: one [Bb*T, D] @ [D, Vt] MXU matmul --------------
    logits = jnp.dot(h_ref[...], w2_ref[...],
                     preferred_element_type=jnp.float32) + b2_ref[...]  # [Bb*T, Vt] f32

    # ---- per-batch softmax over the sequence axis (PyTorch dim=1) + bmm -----
    # Small static unroll over the batch block; each iteration is a proven,
    # tile-aligned 2-D pattern (T is a multiple of 8, C/Vt multiples of 128).
    for i in range(Bb):
        lg = logits[i * T:(i + 1) * T, :]                             # [T, Vt]
        m = jnp.max(lg, axis=0, keepdims=True)                        # [1, Vt]
        e = jnp.exp(lg - m)
        inv = pl.reciprocal(jnp.sum(e, axis=0, keepdims=True), approx=True)
        atten = (e * inv).astype(jnp.bfloat16)                        # [T, Vt]
        # bmm(origin_I^T, atten): contract T -> [C, Vt]
        out = lax.dot_general(origin_ref[i], atten,
                              dimension_numbers=(((0,), (0,)), ((), ())),
                              preferred_element_type=jnp.float32)
        out_ref[i] = out.astype(out_ref.dtype)


def parallel_attention(origin_I, bert_out, params, *, b_blk=None, v_tile=512):
    B, T, C = origin_I.shape
    _, _, D = bert_out.shape
    V = params["w2"].shape[1]

    # bf16 operands feed the MXU at native rate; accumulation stays f32 in-kernel.
    origin_bf = origin_I.astype(jnp.bfloat16)
    bert_bf = bert_out.astype(jnp.bfloat16)
    w1 = params["w1"].astype(jnp.bfloat16)
    w2 = params["w2"].astype(jnp.bfloat16)
    b1 = params["b1"].astype(jnp.float32).reshape(1, D)
    b2 = params["b2"].astype(jnp.float32).reshape(1, V)

    # Batch blocking: several batch elements per grid step -> taller MXU pushes,
    # fewer grid steps.
    if b_blk is None:
        b_blk = min(B, 8)
    B_pad = pl.cdiv(B, b_blk) * b_blk
    if B_pad != B:
        pb = B_pad - B
        origin_bf = jnp.pad(origin_bf, ((0, pb), (0, 0), (0, 0)))
        bert_bf = jnp.pad(bert_bf, ((0, pb), (0, 0), (0, 0)))

    # V axis: pad to a lane multiple and tile so w2/logits/out stay lane-dense
    # and bounded in VMEM for any max_vocab_size.
    v_tile = max(128, min(v_tile, pl.cdiv(V, 128) * 128))
    v_tile = pl.cdiv(v_tile, 128) * 128
    V_pad = pl.cdiv(V, v_tile) * v_tile
    if V_pad != V:
        w2 = jnp.pad(w2, ((0, 0), (0, V_pad - V)))
        b2 = jnp.pad(b2, ((0, 0), (0, V_pad - V)))

    n_b = B_pad // b_blk
    n_v = V_pad // v_tile

    cost = pl.CostEstimate(
        flops=(2 * B_pad * T * D * D
               + 2 * B_pad * T * D * V_pad
               + 2 * B_pad * C * T * V_pad),
        transcendentals=B_pad * T * (D + V_pad),
        bytes_accessed=((origin_bf.size + bert_bf.size) * 2
                        + B_pad * C * V_pad * 4
                        + n_b * (w1.size + w2.size) * 2),
    )

    out_full = pl.pallas_call(
        _parallel_attention_kernel,
        out_shape=jax.ShapeDtypeStruct((B_pad, C, V_pad), jnp.float32),
        grid=(n_b, n_v),
        in_specs=[
            pl.BlockSpec((b_blk, T, C), lambda b, v: (b, 0, 0)),   # origin_I
            pl.BlockSpec((b_blk, T, D), lambda b, v: (b, 0, 0)),   # bert_out
            pl.BlockSpec((D, D),        lambda b, v: (0, 0)),      # w1 (resident)
            pl.BlockSpec((1, D),        lambda b, v: (0, 0)),      # b1
            pl.BlockSpec((D, v_tile),   lambda b, v: (0, v)),      # w2 tile
            pl.BlockSpec((1, v_tile),   lambda b, v: (0, v)),      # b2 tile
        ],
        out_specs=pl.BlockSpec((b_blk, C, v_tile), lambda b, v: (b, 0, v)),
        scratch_shapes=[pltpu.VMEM((b_blk * T, D), jnp.bfloat16)],  # hoisted h
        compiler_params=pltpu.CompilerParams(
            dimension_semantics=("parallel", "arbitrary")),
        cost_estimate=cost,
    )(origin_bf, bert_bf, w1, b1, w2, b2)

    return out_full[:B, :, :V]


# ---------------- pure-JAX reference (PyTorch semantics, eval mode) ----------
def _ref_forward(origin_I, bert_out, params):
    h = jnp.tanh(bert_out @ params["w1"] + params["b1"])
    logits = h @ params["w2"] + params["b2"]
    atten = jax.nn.softmax(logits, axis=1)                 # softmax over sequence
    return jnp.einsum("btc,btv->bcv", origin_I, atten)     # origin_I^T @ atten


# ---------------- parameter init (deterministic, PyTorch-shaped) -------------
def init_params(key, dim_c, max_vocab_size):
    ks = jax.random.split(key, 4)
    s = 1.0 / jnp.sqrt(dim_c)
    # PyTorch nn.Linear layouts [out, in], transposed to right-multiply layout.
    w1 = jax.random.uniform(ks[0], (dim_c, dim_c), jnp.float32, -s, s).T          # [D, D]
    b1 = jax.random.uniform(ks[1], (dim_c,), jnp.float32, -s, s)[None, :]         # [1, D]
    w2 = jax.random.uniform(ks[2], (max_vocab_size, dim_c), jnp.float32, -s, s).T # [D, V]
    b2 = jax.random.uniform(ks[3], (max_vocab_size,), jnp.float32, -s, s)[None, :]# [1, V]
    return dict(w1=w1, b1=b1, w2=w2, b2=b2)


if __name__ == "__main__":
    B, T = 2, 32
    dim_c = 128        # cfg.dim_c (lane-aligned)
    vocab = 300        # cfg.max_vocab_size (not a lane multiple -> exercises V padding)

    key = jax.random.PRNGKey(0)
    k_o, k_b, k_p = jax.random.split(key, 3)
    origin_I = jax.random.normal(k_o, (B, T, dim_c), jnp.float32)
    bert_out = jax.random.normal(k_b, (B, T, dim_c), jnp.float32)
    params = init_params(k_p, dim_c, vocab)

    # v_tile=128 forces several V tiles so the hoisted-h / scratch-reuse path runs.
    fn = jax.jit(functools.partial(parallel_attention, v_tile=128))
    out = fn(origin_I, bert_out, params)
    jax.block_until_ready(out)

    ref = _ref_forward(origin_I, bert_out, params)
    assert out.shape == (B, dim_c, vocab)
    err = jnp.max(jnp.abs(out - ref))
    assert jnp.allclose(out, ref, atol=1e-2, rtol=1e-2), f"max abs err {err}"
    print("KERNEL_OK")
</pallas_src>

<mosaic_0001>
module attributes {stable_mosaic.version = 11 : i64} {
  func.func @_parallel_attention_kernel(%arg0: i32, %arg1: i32, %arg2: memref<2x32x128xbf16, #tpu.memory_space<vmem>>, %arg3: memref<2x32x128xbf16, #tpu.memory_space<vmem>>, %arg4: memref<128x128xbf16, #tpu.memory_space<vmem>>, %arg5: memref<1x128xf32, #tpu.memory_space<vmem>>, %arg6: memref<128x128xbf16, #tpu.memory_space<vmem>>, %arg7: memref<1x128xf32, #tpu.memory_space<vmem>>, %arg8: memref<2x128x128xf32, #tpu.memory_space<vmem>>, %arg9: memref<64x128xbf16, #tpu.memory_space<vmem>>) attributes {dimension_semantics = [#tpu.dimension_semantics<parallel>, #tpu.dimension_semantics<arbitrary>], iteration_bounds = array<i64: 1, 3>, scalar_prefetch = 0 : i64, scratch_operands = 1 : i64, tpu.core_type = #tpu.core_type<tc>, window_params = [{transform_indices = @transform_0, window_bounds = array<i64: 2, 32, 128>}, {transform_indices = @transform_1, window_bounds = array<i64: 2, 32, 128>}, {pipeline_mode = #tpu.pipeline_mode<synchronous>, transform_indices = @transform_2, window_bounds = array<i64: 128, 128>}, {pipeline_mode = #tpu.pipeline_mode<synchronous>, transform_indices = @transform_3, window_bounds = array<i64: 1, 128>}, {transform_indices = @transform_4, window_bounds = array<i64: 128, 128>}, {transform_indices = @transform_5, window_bounds = array<i64: 1, 128>}, {transform_indices = @transform_6, window_bounds = array<i64: 2, 128, 128>}]} {
    %c0_i32 = arith.constant 0 : i32
    %0 = arith.cmpi eq, %arg1, %c0_i32 : i32
    %1 = arith.extui %0 : i1 to i32
    %c0_i32_0 = arith.constant 0 : i32
    %2 = arith.cmpi ne, %1, %c0_i32_0 : i32
    scf.if %2 {
      %c0_23 = arith.constant 0 : index
      %c0_24 = arith.constant 0 : index
      %c0_25 = arith.constant 0 : index
      %45 = vector.load %arg3[%c0_23, %c0_24, %c0_25] : memref<2x32x128xbf16, #tpu.memory_space<vmem>>, vector<2x32x128xbf16>
      %46 = vector.shape_cast %45 : vector<2x32x128xbf16> to vector<64x128xbf16>
      %c0_26 = arith.constant 0 : index
      %c0_27 = arith.constant 0 : index
      %47 = vector.load %arg4[%c0_26, %c0_27] : memref<128x128xbf16, #tpu.memory_space<vmem>>, vector<128x128xbf16>
      %cst_28 = arith.constant dense<0.000000e+00> : vector<64x128xf32>
      %48 = tpu.matmul %46, %47, %cst_28 {dimension_numbers = #tpu.dot_dimension_numbers<[1], [0], [0], [1], [0, 0, 1, 1], [], []>} : vector<64x128xbf16>, vector<128x128xbf16>, vector<64x128xf32> -> vector<64x128xf32>
      %c0_29 = arith.constant 0 : index
      %c0_30 = arith.constant 0 : index
      %49 = vector.load %arg5[%c0_29, %c0_30] : memref<1x128xf32, #tpu.memory_space<vmem>>, vector<1x128xf32>
      %50 = vector.broadcast %49 : vector<1x128xf32> to vector<64x128xf32>
      %51 = arith.addf %48, %50 : vector<64x128xf32>
      %52 = math.tanh %51 : vector<64x128xf32>
      %53 = arith.truncf %52 : vector<64x128xf32> to vector<64x128xbf16>
      %c0_31 = arith.constant 0 : index
      %c0_32 = arith.constant 0 : index
      %54 = vector.load %arg9[%c0_31, %c0_32] : memref<64x128xbf16, #tpu.memory_space<vmem>>, vector<64x128xbf16>
      tpu.vector_store %arg9[%c0_31, %c0_32], %53 {strides = array<i32>} : memref<64x128xbf16, #tpu.memory_space<vmem>>, vector<64x128xbf16>,
    } else {
    }
    %c0 = arith.constant 0 : index
    %c0_1 = arith.constant 0 : index
    %3 = vector.load %arg9[%c0, %c0_1] : memref<64x128xbf16, #tpu.memory_space<vmem>>, vector<64x128xbf16>
    %c0_2 = arith.constant 0 : index
    %c0_3 = arith.constant 0 : index
    %4 = vector.load %arg6[%c0_2, %c0_3] : memref<128x128xbf16, #tpu.memory_space<vmem>>, vector<128x128xbf16>
    %cst = arith.constant dense<0.000000e+00> : vector<64x128xf32>
    %5 = tpu.matmul %3, %4, %cst {dimension_numbers = #tpu.dot_dimension_numbers<[1], [0], [0], [1], [0, 0, 1, 1], [], []>} : vector<64x128xbf16>, vector<128x128xbf16>, vector<64x128xf32> -> vector<64x128xf32>
    %c0_4 = arith.constant 0 : index
    %c0_5 = arith.constant 0 : index
    %6 = vector.load %arg7[%c0_4, %c0_5] : memref<1x128xf32, #tpu.memory_space<vmem>>, vector<1x128xf32>
    %7 = vector.broadcast %6 : vector<1x128xf32> to vector<64x128xf32>
    %8 = arith.addf %5, %7 : vector<64x128xf32>
    %9 = vector.extract_strided_slice %8 {offsets = [0, 0], sizes = [32, 128], strides = [1, 1]} : vector<64x128xf32> to vector<32x128xf32>
    %cst_6 = arith.constant dense<0xFF800000> : vector<128xf32>
    %10 = vector.multi_reduction <maximumf>, %9, %cst_6 [0] : vector<32x128xf32> to vector<128xf32>
    %11 = vector.shape_cast %10 : vector<128xf32> to vector<1x128xf32>
    %12 = vector.broadcast %11 : vector<1x128xf32> to vector<32x128xf32>
    %13 = arith.subf %9, %12 : vector<32x128xf32>
    %14 = math.exp %13 : vector<32x128xf32>
    %cst_7 = arith.constant dense<0.000000e+00> : vector<128xf32>
    %15 = vector.multi_reduction <add>, %14, %cst_7 [0] : vector<32x128xf32> to vector<128xf32>
    %16 = vector.shape_cast %15 : vector<128xf32> to vector<1x128xf32>
    %17 = tpu.reciprocal %16 {approx = true} : vector<1x128xf32> -> vector<1x128xf32>
    %18 = vector.broadcast %17 : vector<1x128xf32> to vector<32x128xf32>
    %19 = arith.mulf %14, %18 : vector<32x128xf32>
    %20 = arith.truncf %19 : vector<32x128xf32> to vector<32x128xbf16>
    %c0_8 = arith.constant 0 : index
    %c0_9 = arith.constant 0 : index
    %c0_10 = arith.constant 0 : index
    %21 = vector.load %arg2[%c0_8, %c0_9, %c0_10] : memref<2x32x128xbf16, #tpu.memory_space<vmem>>, vector<1x32x128xbf16>
    %22 = vector.shape_cast %21 : vector<1x32x128xbf16> to vector<32x128xbf16>
    %cst_11 = arith.constant dense<0.000000e+00> : vector<128x128xf32>
    %23 = tpu.matmul %22, %20, %cst_11 {dimension_numbers = #tpu.dot_dimension_numbers<[0], [0], [1], [1], [0, 1, 1, 1], [], []>} : vector<32x128xbf16>, vector<32x128xbf16>, vector<128x128xf32> -> vector<128x128xf32>
    %c0_12 = arith.constant 0 : index
    %c0_13 = arith.constant 0 : index
    %c0_14 = arith.constant 0 : index
    %24 = vector.load %arg8[%c0_12, %c0_13, %c0_14] : memref<2x128x128xf32, #tpu.memory_space<vmem>>, vector<1x128x128xf32>
    %25 = vector.shape_cast %24 : vector<1x128x128xf32> to vector<128x128xf32>
    %26 = vector.shape_cast %23 : vector<128x128xf32> to vector<1x128x128xf32>
    tpu.vector_store %arg8[%c0_12, %c0_13, %c0_14], %26 {strides = array<i32>} : memref<2x128x128xf32, #tpu.memory_space<vmem>>, vector<1x128x128xf32>,
    %27 = vector.extract_strided_slice %8 {offsets = [32, 0], sizes = [32, 128], strides = [1, 1]} : vector<64x128xf32> to vector<32x128xf32>
    %cst_15 = arith.constant dense<0xFF800000> : vector<128xf32>
    %28 = vector.multi_reduction <maximumf>, %27, %cst_15 [0] : vector<32x128xf32> to vector<128xf32>
    %29 = vector.shape_cast %28 : vector<128xf32> to vector<1x128xf32>
    %30 = vector.broadcast %29 : vector<1x128xf32> to vector<32x128xf32>
    %31 = arith.subf %27, %30 : vector<32x128xf32>
    %32 = math.exp %31 : vector<32x128xf32>
    %cst_16 = arith.constant dense<0.000000e+00> : vector<128xf32>
    %33 = vector.multi_reduction <add>, %32, %cst_16 [0] : vector<32x128xf32> to vector<128xf32>
    %34 = vector.shape_cast %33 : vector<128xf32> to vector<1x128xf32>
    %35 = tpu.reciprocal %34 {approx = true} : vector<1x128xf32> -> vector<1x128xf32>
    %36 = vector.broadcast %35 : vector<1x128xf32> to vector<32x128xf32>
    %37 = arith.mulf %32, %36 : vector<32x128xf32>
    %38 = arith.truncf %37 : vector<32x128xf32> to vector<32x128xbf16>
    %c1 = arith.constant 1 : index
    %c0_17 = arith.constant 0 : index
    %c0_18 = arith.constant 0 : index
    %39 = vector.load %arg2[%c1, %c0_17, %c0_18] : memref<2x32x128xbf16, #tpu.memory_space<vmem>>, vector<1x32x128xbf16>
    %40 = vector.shape_cast %39 : vector<1x32x128xbf16> to vector<32x128xbf16>
    %cst_19 = arith.constant dense<0.000000e+00> : vector<128x128xf32>
    %41 = tpu.matmul %40, %38, %cst_19 {dimension_numbers = #tpu.dot_dimension_numbers<[0], [0], [1], [1], [0, 1, 1, 1], [], []>} : vector<32x128xbf16>, vector<32x128xbf16>, vector<128x128xf32> -> vector<128x128xf32>
    %c1_20 = arith.constant 1 : index
    %c0_21 = arith.constant 0 : index
    %c0_22 = arith.constant 0 : index
    %42 = vector.load %arg8[%c1_20, %c0_21, %c0_22] : memref<2x128x128xf32, #tpu.memory_space<vmem>>, vector<1x128x128xf32>
    %43 = vector.shape_cast %42 : vector<1x128x128xf32> to vector<128x128xf32>
    %44 = vector.shape_cast %41 : vector<128x128xf32> to vector<1x128x128xf32>
    tpu.vector_store %arg8[%c1_20, %c0_21, %c0_22], %44 {strides = array<i32>} : memref<2x128x128xf32, #tpu.memory_space<vmem>>, vector<1x128x128xf32>,
    return
  }
  func.func @transform_0(%arg0: i32, %arg1: i32) -> (i32, i32, i32) {
    %c0_i32 = arith.constant 0 : i32
    %c0_i32_0 = arith.constant 0 : i32
    %c0_i32_1 = arith.constant 0 : i32
    return %arg0, %c0_i32, %c0_i32_0 : i32, i32, i32
  }
  func.func @transform_1(%arg0: i32, %arg1: i32) -> (i32, i32, i32) {
    %c0_i32 = arith.constant 0 : i32
    %c0_i32_0 = arith.constant 0 : i32
    %c0_i32_1 = arith.constant 0 : i32
    return %arg0, %c0_i32, %c0_i32_0 : i32, i32, i32
  }
  func.func @transform_2(%arg0: i32, %arg1: i32) -> (i32, i32) {
    %c0_i32 = arith.constant 0 : i32
    %c0_i32_0 = arith.constant 0 : i32
    %c0_i32_1 = arith.constant 0 : i32
    return %c0_i32, %c0_i32_0 : i32, i32
  }
  func.func @transform_3(%arg0: i32, %arg1: i32) -> (i32, i32) {
    %c0_i32 = arith.constant 0 : i32
    %c0_i32_0 = arith.constant 0 : i32
    %c0_i32_1 = arith.constant 0 : i32
    return %c0_i32, %c0_i32_0 : i32, i32
  }
  func.func @transform_4(%arg0: i32, %arg1: i32) -> (i32, i32) {
    %c0_i32 = arith.constant 0 : i32
    %c0_i32_0 = arith.constant 0 : i32
    return %c0_i32, %arg1 : i32, i32
  }
  func.func @transform_5(%arg0: i32, %arg1: i32) -> (i32, i32) {
    %c0_i32 = arith.constant 0 : i32
    %c0_i32_0 = arith.constant 0 : i32
    return %c0_i32, %arg1 : i32, i32
  }
  func.func @transform_6(%arg0: i32, %arg1: i32) -> (i32, i32, i32) {
    %c0_i32 = arith.constant 0 : i32
    %c0_i32_0 = arith.constant 0 : i32
    return %arg0, %c0_i32, %arg1 : i32, i32, i32
  }
}

</mosaic_0001>

<llo_original>
// kernel: parallel_attention.1
$region0: #{parallel_attention.1}
  #allocation0 [shape = 'u32[]', space=smem, size = 0x4, offset = 0x4, fixed_abs, tag = 'smem constant byte address 0x4 - core index']
  #allocation1 [shape = 'u32[144,128]{1,0:T(1,128)}', space=vmem, size = 0x12000, scoped, tag = 'internal scratch']
  #allocation2 [shape = 'bf16[64,128]{1,0:T(16,128)(2,1)}', space=vmem, size = 0x4000, scoped, tag = 'scratch operand']
  %s0 = inlined_call_operand.vmem [shape: bf16[2,32,128], index: 0, kind: input, shape index: {}]
  %s1 = inlined_call_operand.vmem [shape: bf16[2,32,128], index: 1, kind: input, shape index: {}]
  %s2 = inlined_call_operand.vmem [shape: bf16[128,128], index: 2, kind: input, shape index: {}]
  %s3 = inlined_call_operand.vmem [shape: f32[1,128], index: 3, kind: input, shape index: {}]
  %s4 = inlined_call_operand.vmem [shape: bf16[128,384], index: 4, kind: input, shape index: {}]
  %s5 = inlined_call_operand.vmem [shape: f32[1,384], index: 5, kind: input, shape index: {}]
  %s6 = inlined_call_operand.vmem [shape: f32[2,128,384], index: 6, kind: output, shape index: {}]
  %s7 = sld [smem:[#allocation0]]
  $region136: #{parallel_attention.1} parent=0
    _
  %s9 = ssub.s32 1, %s7
  %s10 = scalar_select 0, %s9, %s7
  $region1: #{parallel_attention.1} parent=0
    #allocation3 [shape = 'u8[65536]{0}', space=vmem, size = 0x10000, scoped, tag = 'input window, operand 4']
    #allocation4 [shape = 'u8[262144]{0}', space=vmem, size = 0x40000, scoped, tag = 'output window, operand 0']
    loop: start=0, step=1, limit=5
    $region2: #{parallel_attention.1} parent=1 // loop_pre_header
      _
    $region3: #{parallel_attention.1} parent=1 // loop_header
      %s12 = sphi 0, %s16
      %p13 = scmp.ge.s32.totalorder %s12, 5
      %s19 = sphi 0, %s31
      %s20 = sphi 0, %s27
      %s21 = sphi 0, %s19
      %s22 = sphi 0, %s20
      %s23 = sphi 0, %s21
      %s24 = sphi 0, %s22
      %s34 = sphi 0, %s36
      %s37 = sphi 0, %s34
      %s38 = sphi 0, %s37
      %s54 = sphi 0, %s38
      %s60 = sphi 0, %s62
      %s63 = sphi 0, %s60
      %s64 = sphi 0, %s63
      %s80 = sphi 0, %s64
      %s84 = sphi 0, %s84
      %s86 = sphi 0, %s84
      %s87 = sphi 0, %s86
      %s101 = sphi 0, %s87
      %s105 = sphi 0, %s105
      %s107 = sphi 0, %s105
      %s108 = sphi 0, %s107
      %s122 = sphi 0, %s108
      %s128 = sphi 0, %s130
      %s131 = sphi 0, %s128
      %s132 = sphi 0, %s131
      %s148 = sphi 0, %s132
      %s154 = sphi 0, %s156
      %s157 = sphi 0, %s154
      %s158 = sphi 0, %s157
      %s174 = sphi 0, %s158
      %s182 = sphi 0, %s184
      %s185 = sphi 0, %s182
      %s186 = sphi 0, %s185
      %s202 = sphi 0, %s186
    $region4: #{parallel_attention.1} parent=1 // loop_header_branch
      %15 = sbr.rel (%p13) target = $region8
    $region5: #{parallel_attention.1} parent=1 // loop_body
      %s17 = ssub.s32 %s12, 1
      %s18 = ssub.s32 %s12, 2
      %s25 = sadd.s32 1, %s20
      %p26 = scmp.ge.s32.totalorder %s25, 3
      %s27 = scalar_select %p26, 0, %s25
      %s28 = sadd.s32 1, %s19
      %s29 = scalar_select %p26, %s28, %s19
      %p30 = scmp.ge.s32.totalorder %s29, 1
      %s31 = scalar_select %p30, 0, %s29
      %s32 = ssub.s32 %s19, %s31
      %p33 = scmp.eq.s32.totalorder %s32, 0
      %s35 = sadd.s32 %s34, 1
      %s36 = scalar_select %p33, %s34, %s35
      %p39 = pneg %p33
      %p40 = scmp.eq.s32.totalorder %s12, 2
      %p41 = por %p39, %p40
      %p42 = scmp.ne.s32.totalorder %s34, %s37
      %p43 = scmp.eq.s32.totalorder %s12, 0
      %p44 = por %p42, %p43
      %p45 = scmp.ne.s32.totalorder %s34, %s37
      %p46 = scmp.eq.s32.totalorder %s17, 2
      %p47 = por %p45, %p46
      %p48 = scmp.ne.s32.totalorder %s37, %s38
      %p49 = scmp.eq.s32.totalorder %s17, 0
      %p50 = por %p48, %p49
      %p51 = scmp.ne.s32.totalorder %s37, %s38
      %p52 = scmp.eq.s32.totalorder %s18, 2
      %p53 = por %p51, %p52
      %p55 = scmp.ne.s32.totalorder %s38, %s54
      %p56 = scmp.eq.s32.totalorder %s18, 0
      %p57 = por %p55, %p56
      %s58 = ssub.s32 %s19, %s31
      %p59 = scmp.eq.s32.totalorder %s58, 0
      %s61 = sadd.s32 %s60, 1
      %s62 = scalar_select %p59, %s60, %s61
      %p65 = pneg %p59
      %p66 = scmp.eq.s32.totalorder %s12, 2
      %p67 = por %p65, %p66
      %p68 = scmp.ne.s32.totalorder %s60, %s63
      %p69 = scmp.eq.s32.totalorder %s12, 0
      %p70 = por %p68, %p69
      %p71 = scmp.ne.s32.totalorder %s60, %s63
      %p72 = scmp.eq.s32.totalorder %s17, 2
      %p73 = por %p71, %p72
      %p74 = scmp.ne.s32.totalorder %s63, %s64
      %p75 = scmp.eq.s32.totalorder %s17, 0
      %p76 = por %p74, %p75
      %p77 = scmp.ne.s32.totalorder %s63, %s64
      %p78 = scmp.eq.s32.totalorder %s18, 2
      %p79 = por %p77, %p78
      %p81 = scmp.ne.s32.totalorder %s64, %s80
      %p82 = scmp.eq.s32.totalorder %s18, 0
      %p83 = por %p81, %p82
      %s85 = sadd.s32 %s84, 1
      %p88 = scmp.eq.s32.totalorder %s12, 2
      %p89 = scmp.ne.s32.totalorder %s84, %s86
      %p90 = scmp.eq.s32.totalorder %s12, 0
      %p91 = por %p89, %p90
      %p92 = scmp.ne.s32.totalorder %s84, %s86
      %p93 = scmp.eq.s32.totalorder %s17, 2
      %p94 = por %p92, %p93
      %p95 = scmp.ne.s32.totalorder %s86, %s87
      %p96 = scmp.eq.s32.totalorder %s17, 0
      %p97 = por %p95, %p96
      %p98 = scmp.ne.s32.totalorder %s86, %s87
      %p99 = scmp.eq.s32.totalorder %s18, 2
      %p100 = por %p98, %p99
      %p102 = scmp.ne.s32.totalorder %s87, %s101
      %p103 = scmp.eq.s32.totalorder %s18, 0
      %p104 = por %p102, %p103
      %s106 = sadd.s32 %s105, 1
      %p109 = scmp.eq.s32.totalorder %s12, 2
      %p110 = scmp.ne.s32.totalorder %s105, %s107
      %p111 = scmp.eq.s32.totalorder %s12, 0
      %p112 = por %p110, %p111
      %p113 = scmp.ne.s32.totalorder %s105, %s107
      %p114 = scmp.eq.s32.totalorder %s17, 2
      %p115 = por %p113, %p114
      %p116 = scmp.ne.s32.totalorder %s107, %s108
      %p117 = scmp.eq.s32.totalorder %s17, 0
      %p118 = por %p116, %p117
      %p119 = scmp.ne.s32.totalorder %s107, %s108
      %p120 = scmp.eq.s32.totalorder %s18, 2
      %p121 = por %p119, %p120
      %p123 = scmp.ne.s32.totalorder %s108, %s122
      %p124 = scmp.eq.s32.totalorder %s18, 0
      %p125 = por %p123, %p124
      %s126 = ssub.s32 %s20, %s27
      %p127 = scmp.eq.s32.totalorder %s126, 0
      %s129 = sadd.s32 %s128, 1
      %s130 = scalar_select %p127, %s128, %s129
      %p133 = pneg %p127
      %p134 = scmp.eq.s32.totalorder %s12, 2
      %p135 = por %p133, %p134
      %p136 = scmp.ne.s32.totalorder %s128, %s131
      %p137 = scmp.eq.s32.totalorder %s12, 0
      %p138 = por %p136, %p137
      %p139 = scmp.ne.s32.totalorder %s128, %s131
      %p140 = scmp.eq.s32.totalorder %s17, 2
      %p141 = por %p139, %p140
      %p142 = scmp.ne.s32.totalorder %s131, %s132
      %p143 = scmp.eq.s32.totalorder %s17, 0
      %p144 = por %p142, %p143
      %p145 = scmp.ne.s32.totalorder %s131, %s132
      %p146 = scmp.eq.s32.totalorder %s18, 2
      %p147 = por %p145, %p146
      %p149 = scmp.ne.s32.totalorder %s132, %s148
      %p150 = scmp.eq.s32.totalorder %s18, 0
      %p151 = por %p149, %p150
      %s152 = ssub.s32 %s20, %s27
      %p153 = scmp.eq.s32.totalorder %s152, 0
      %s155 = sadd.s32 %s154, 1
      %s156 = scalar_select %p153, %s154, %s155
      %p159 = pneg %p153
      %p160 = scmp.eq.s32.totalorder %s12, 2
      %p161 = por %p159, %p160
      %p162 = scmp.ne.s32.totalorder %s154, %s157
      %p163 = scmp.eq.s32.totalorder %s12, 0
      %p164 = por %p162, %p163
      %p165 = scmp.ne.s32.totalorder %s154, %s157
      %p166 = scmp.eq.s32.totalorder %s17, 2
      %p167 = por %p165, %p166
      %p168 = scmp.ne.s32.totalorder %s157, %s158
      %p169 = scmp.eq.s32.totalorder %s17, 0
      %p170 = por %p168, %p169
      %p171 = scmp.ne.s32.totalorder %s157, %s158
      %p172 = scmp.eq.s32.totalorder %s18, 2
      %p173 = por %p171, %p172
      %p175 = scmp.ne.s32.totalorder %s158, %s174
      %p176 = scmp.eq.s32.totalorder %s18, 0
      %p177 = por %p175, %p176
      %s178 = ssub.s32 %s19, %s31
      %s179 = ssub.s32 %s20, %s27
      %s180 = sor.u32 %s178, %s179
      %p181 = scmp.eq.s32.totalorder %s180, 0
      %s183 = sadd.s32 %s182, 1
      %s184 = scalar_select %p181, %s182, %s183
      %p187 = pneg %p181
      %p188 = scmp.eq.s32.totalorder %s12, 2
      %p189 = por %p187, %p188
      %p190 = scmp.ne.s32.totalorder %s182, %s185
      %p191 = scmp.eq.s32.totalorder %s12, 0
      %p192 = por %p190, %p191
      %p193 = scmp.ne.s32.totalorder %s182, %s185
      %p194 = scmp.eq.s32.totalorder %s17, 2
      %p195 = por %p193, %p194
      %p196 = scmp.ne.s32.totalorder %s185, %s186
      %p197 = scmp.eq.s32.totalorder %s17, 0
      %p198 = por %p196, %p197
      %p199 = scmp.ne.s32.totalorder %s185, %s186
      %p200 = scmp.eq.s32.totalorder %s18, 2
      %p201 = por %p199, %p200
      %p203 = scmp.ne.s32.totalorder %s186, %s202
      %p204 = scmp.eq.s32.totalorder %s18, 0
      %p205 = por %p203, %p204
      %p206 = scmp.le.s32.totalorder 1, %s12
      %p207 = scmp.lt.s32.totalorder %s12, 4
      %p208 = pnand %p206, %p207
      %p209 = pneg %p208
      // Predicated region
      $region9: #{parallel_attention.1} parent=5 // pred_check
        _
      $region10: #{parallel_attention.1} parent=5 // pred_check_branch
        %211 = sbr.rel (%p208) target = $region12
      $region11: #{parallel_attention.1} parent=5 // pred_region
        %s212 = ssub.s32 %s12, 1
        // Predicated region
        $region13: #{parallel_attention.1} parent=11 // pred_check
          %p213 = pneg %p50
        $region14: #{parallel_attention.1} parent=11 // pred_check_branch
          %215 = sbr.rel (%p213) target = $region16
        $region15: #{parallel_attention.1} parent=11 // pred_region
          %s216 = smul.u32 2, %s21
          %p217 = scmp.lt.s32.totalorder %s216, 1
          %s218 = scalar_select %p217, %s216, 1
          %s219 = smul.addr %s218, 4
          %s220 = smul.addr %s219, 4
          %s221 = scalar_lea.vmem %s0, %s220
          %s222 = smul.u32 2, %s21
        $region16: #{parallel_attention.1} parent=11 // pred_fallthru
          _
        // Predicated region
        $region17: #{parallel_attention.1} parent=11 // pred_check
          %p223 = pneg %p76
        $region18: #{parallel_attention.1} parent=11 // pred_check_branch
          %225 = sbr.rel (%p223) target = $region20
        $region19: #{parallel_attention.1} parent=11 // pred_region
          %s226 = smul.u32 2, %s21
          %p227 = scmp.lt.s32.totalorder %s226, 1
          %s228 = scalar_select %p227, %s226, 1
          %s229 = smul.addr %s228, 4
          %s230 = smul.addr %s229, 4
          %s231 = scalar_lea.vmem %s1, %s230
          %s232 = smul.u32 2, %s21
        $region20: #{parallel_attention.1} parent=11 // pred_fallthru
          _
        // Predicated region
        $region21: #{parallel_attention.1} parent=11 // pred_check
          %p233 = pneg %p97
        $region22: #{parallel_attention.1} parent=11 // pred_check_branch
          %235 = sbr.rel (%p233) target = $region24
        $region23: #{parallel_attention.1} parent=11 // pred_region
          _
        $region24: #{parallel_attention.1} parent=11 // pred_fallthru
          _
        // Predicated region
        $region25: #{parallel_attention.1} parent=11 // pred_check
          %p236 = pneg %p118
        $region26: #{parallel_attention.1} parent=11 // pred_check_branch
          %238 = sbr.rel (%p236) target = $region28
        $region27: #{parallel_attention.1} parent=11 // pred_region
          _
        $region28: #{parallel_attention.1} parent=11 // pred_fallthru
          _
      $region12: #{parallel_attention.1} parent=5 // pred_fallthru
        _
      %p239 = scmp.lt.s32.totalorder %s12, 3
      // Predicated region
      $region29: #{parallel_attention.1} parent=5 // pred_check
        %p240 = pneg %p239
      $region30: #{parallel_attention.1} parent=5 // pred_check_branch
        %242 = sbr.rel (%p240) target = $region32
      $region31: #{parallel_attention.1} parent=5 // pred_region
        // Predicated region
        $region33: #{parallel_attention.1} parent=31 // pred_check
          %p243 = pneg %p138
        $region34: #{parallel_attention.1} parent=31 // pred_check_branch
          %245 = sbr.rel (%p243) target = $region36
        $region35: #{parallel_attention.1} parent=31 // pred_region
          %s246 = sand.u32 %s128, 1
          %s247 = sand.u32 %s128, 1
          %s248 = smul.addr %s247, 64
          %s249 = scalar_lea.vmem [#allocation3], %s248
          %s250 = smul.addr %s20, 4
          %s251 = scalar_lea.vmem %s4, %s250
          // Predicated region
          $region37: #{parallel_attention.1} parent=35 // pred_check
            _
          $region38: #{parallel_attention.1} parent=35 // pred_check_branch
            %253 = sbr.rel (0) target = $region40
          $region39: #{parallel_attention.1} parent=35 // pred_region
            // Predicated region
            $region41: #{parallel_attention.1} parent=39 // pred_check
              _
            $region42: #{parallel_attention.1} parent=39 // pred_check_branch
              %255 = sbr.rel target = $region44
            $region43: #{parallel_attention.1} parent=39 // pred_region
              // Predicated region
              $region56: #{parallel_attention.1} parent=43 // pred_check
                _
              $region57: #{parallel_attention.1} parent=43 // pred_check_branch
                %300 = sbr.rel (0) target = $region59
              $region58: #{parallel_attention.1} parent=43 // pred_region
                loop: start=0, step=1, limit=1
                $region60: #{parallel_attention.1} parent=58 // loop_pre_header
                  _
                $region61: #{parallel_attention.1} parent=58 // loop_header
                  %s302 = sphi 0, %s306
                  %p303 = scmp.ge.s32.totalorder %s302, 1
                  %s307 = sphi %s251, %s251
                  %s308 = sphi %s249, %s249
                $region62: #{parallel_attention.1} parent=58 // loop_header_branch
                  %305 = sbr.rel (%p303) target = $region66
                $region63: #{parallel_attention.1} parent=58 // loop_body
                  _
                $region64: #{parallel_attention.1} parent=58 // loop_footer
                  %s306 = sadd.s32 1, %s302
                $region65: #{parallel_attention.1} parent=58 // loop_footer_branch
                  %301 = sbr.rel target = $region61
                $region66: #{parallel_attention.1} parent=58 // loop_exit
                  _
                loop: start=0, step=1, limit=1
                $region67: #{parallel_attention.1} parent=58 // loop_pre_header
                  _
                $region68: #{parallel_attention.1} parent=58 // loop_header
                  %s311 = sphi 0, %s315
                  %p312 = scmp.ge.s32.totalorder %s311, 1
                  %s316 = sphi %s251, %s251
                  %s317 = sphi %s249, %s249
                $region69: #{parallel_attention.1} parent=58 // loop_header_branch
                  %314 = sbr.rel (%p312) target = $region73
                $region70: #{parallel_attention.1} parent=58 // loop_body
                  %v318 = vld [vmem:[%s316] sm:$0xf]
                  %319 = vst [vmem:[%s317] sm:$0xf] %v318
                  %v320 = vld [vmem:[%s316 + $0xc] sm:$0xf]
                  %321 = vst [vmem:[%s317 + $0x4] sm:$0xf] %v320
                  %v322 = vld [vmem:[%s316 + $0x18] sm:$0xf]
                  %323 = vst [vmem:[%s317 + $0x8] sm:$0xf] %v322
                  %v324 = vld [vmem:[%s316 + $0x24] sm:$0xf]
                  %325 = vst [vmem:[%s317 + $0xc] sm:$0xf] %v324
                  %v326 = vld [vmem:[%s316 + $0x30] sm:$0xf]
                  %327 = vst [vmem:[%s317 + $0x10] sm:$0xf] %v326
                  %v328 = vld [vmem:[%s316 + $0x3c] sm:$0xf]
                  %329 = vst [vmem:[%s317 + $0x14] sm:$0xf] %v328
                  %v330 = vld [vmem:[%s316 + $0x48] sm:$0xf]
                  %331 = vst [vmem:[%s317 + $0x18] sm:$0xf] %v330
                  %v332 = vld [vmem:[%s316 + $0x54] sm:$0xf]
                  %333 = vst [vmem:[%s317 + $0x1c] sm:$0xf] %v332
                  %v334 = vld [vmem:[%s316 + $0x60] sm:$0xf]
                  %335 = vst [vmem:[%s317 + $0x20] sm:$0xf] %v334
                  %v336 = vld [vmem:[%s316 + $0x6c] sm:$0xf]
                  %337 = vst [vmem:[%s317 + $0x24] sm:$0xf] %v336
                  %v338 = vld [vmem:[%s316 + $0x78] sm:$0xf]
                  %339 = vst [vmem:[%s317 + $0x28] sm:$0xf] %v338
                  %v340 = vld [vmem:[%s316 + $0x84] sm:$0xf]
                  %341 = vst [vmem:[%s317 + $0x2c] sm:$0xf] %v340
                  %v342 = vld [vmem:[%s316 + $0x90] sm:$0xf]
                  %343 = vst [vmem:[%s317 + $0x30] sm:$0xf] %v342
                  %v344 = vld [vmem:[%s316 + $0x9c] sm:$0xf]
                  %345 = vst [vmem:[%s317 + $0x34] sm:$0xf] %v344
                  %v346 = vld [vmem:[%s316 + $0xa8] sm:$0xf]
                  %347 = vst [vmem:[%s317 + $0x38] sm:$0xf] %v346
                  %v348 = vld [vmem:[%s316 + $0xb4] sm:$0xf]
                  %349 = vst [vmem:[%s317 + $0x3c] sm:$0xf] %v348
                $region71: #{parallel_attention.1} parent=58 // loop_footer
                  %s315 = sadd.s32 1, %s311
                $region72: #{parallel_attention.1} parent=58 // loop_footer_branch
                  %310 = sbr.rel target = $region68
                $region73: #{parallel_attention.1} parent=58 // loop_exit
                  _
              $region59: #{parallel_attention.1} parent=43 // pred_fallthru
                _
            $region44: #{parallel_attention.1} parent=39 // pred_fallthru
              _
            // Predicated region
            $region45: #{parallel_attention.1} parent=39 // pred_check
              _
            $region46: #{parallel_attention.1} parent=39 // pred_check_branch
              %257 = sbr.rel (0) target = $region48
            $region47: #{parallel_attention.1} parent=39 // pred_region
              loop: start=0, step=1, limit=1
              $region49: #{parallel_attention.1} parent=47 // loop_pre_header
                _
              $region50: #{parallel_attention.1} parent=47 // loop_header
                %s260 = sphi 0, %s264
                %p261 = scmp.ge.s32.totalorder %s260, 1
                %s265 = sphi %s251, %s251
                %s266 = sphi %s249, %s249
              $region51: #{parallel_attention.1} parent=47 // loop_header_branch
                %263 = sbr.rel (%p261) target = $region55
              $region52: #{parallel_attention.1} parent=47 // loop_body
                %v267 = vld [vmem:[%s265] sm:$0xf]
                %268 = vst [vmem:[%s266] sm:$0xf] %v267
                %v269 = vld [vmem:[%s265 + $0xc] sm:$0xf]
                %270 = vst [vmem:[%s266 + $0x4] sm:$0xf] %v269
                %v271 = vld [vmem:[%s265 + $0x18] sm:$0xf]
                %272 = vst [vmem:[%s266 + $0x8] sm:$0xf] %v271
                %v273 = vld [vmem:[%s265 + $0x24] sm:$0xf]
                %274 = vst [vmem:[%s266 + $0xc] sm:$0xf] %v273
                %v275 = vld [vmem:[%s265 + $0x30] sm:$0xf]
                %276 = vst [vmem:[%s266 + $0x10] sm:$0xf] %v275
                %v277 = vld [vmem:[%s265 + $0x3c] sm:$0xf]
                %278 = vst [vmem:[%s266 + $0x14] sm:$0xf] %v277
                %v279 = vld [vmem:[%s265 + $0x48] sm:$0xf]
                %280 = vst [vmem:[%s266 + $0x18] sm:$0xf] %v279
                %v281 = vld [vmem:[%s265 + $0x54] sm:$0xf]
                %282 = vst [vmem:[%s266 + $0x1c] sm:$0xf] %v281
                %v283 = vld [vmem:[%s265 + $0x60] sm:$0xf]
                %284 = vst [vmem:[%s266 + $0x20] sm:$0xf] %v283
                %v285 = vld [vmem:[%s265 + $0x6c] sm:$0xf]
                %286 = vst [vmem:[%s266 + $0x24] sm:$0xf] %v285
                %v287 = vld [vmem:[%s265 + $0x78] sm:$0xf]
                %288 = vst [vmem:[%s266 + $0x28] sm:$0xf] %v287
                %v289 = vld [vmem:[%s265 + $0x84] sm:$0xf]
                %290 = vst [vmem:[%s266 + $0x2c] sm:$0xf] %v289
                %v291 = vld [vmem:[%s265 + $0x90] sm:$0xf]
                %292 = vst [vmem:[%s266 + $0x30] sm:$0xf] %v291
                %v293 = vld [vmem:[%s265 + $0x9c] sm:$0xf]
                %294 = vst [vmem:[%s266 + $0x34] sm:$0xf] %v293
                %v295 = vld [vmem:[%s265 + $0xa8] sm:$0xf]
                %296 = vst [vmem:[%s266 + $0x38] sm:$0xf] %v295
                %v297 = vld [vmem:[%s265 + $0xb4] sm:$0xf]
                %298 = vst [vmem:[%s266 + $0x3c] sm:$0xf] %v297
              $region53: #{parallel_attention.1} parent=47 // loop_footer
                %s264 = sadd.s32 1, %s260
              $region54: #{parallel_attention.1} parent=47 // loop_footer_branch
                %259 = sbr.rel target = $region50
              $region55: #{parallel_attention.1} parent=47 // loop_exit
                _
            $region48: #{parallel_attention.1} parent=39 // pred_fallthru
              _
          $region40: #{parallel_attention.1} parent=35 // pred_fallthru
            _
          %350 = vnop
        $region36: #{parallel_attention.1} parent=31 // pred_fallthru
          _
        // Predicated region
        $region74: #{parallel_attention.1} parent=31 // pred_check
          %p351 = pneg %p164
        $region75: #{parallel_attention.1} parent=31 // pred_check_branch
          %353 = sbr.rel (%p351) target = $region77
        $region76: #{parallel_attention.1} parent=31 // pred_region
          %p354 = scmp.lt.s32.totalorder %s20, 2
          %s355 = scalar_select %p354, %s20, 2
          %s356 = scalar_lea.vmem %s5, %s355
        $region77: #{parallel_attention.1} parent=31 // pred_fallthru
          _
      $region32: #{parallel_attention.1} parent=5 // pred_fallthru
        _
      %p357 = scmp.le.s32.totalorder 1, %s12
      %p358 = scmp.lt.s32.totalorder %s12, 4
      %p359 = pnand %p357, %p358
      %p360 = pneg %p359
      // Predicated region
      $region78: #{parallel_attention.1} parent=5 // pred_check
        _
      $region79: #{parallel_attention.1} parent=5 // pred_check_branch
        %362 = sbr.rel (%p359) target = $region81
      $region80: #{parallel_attention.1} parent=5 // pred_region
        %s363 = ssub.s32 %s12, 1
        %s364 = sand.u32 %s131, 1
        %s365 = sand.u32 %s131, 1
        %s366 = smul.addr %s365, 64
        %s367 = scalar_lea.vmem [#allocation3], %s366
        // Predicated region
        $region82: #{parallel_attention.1} parent=80 // pred_check
          %p368 = pneg %p144
        $region83: #{parallel_attention.1} parent=80 // pred_check_branch
          %370 = sbr.rel (%p368) target = $region85
        $region84: #{parallel_attention.1} parent=80 // pred_region
          _
        $region85: #{parallel_attention.1} parent=80 // pred_fallthru
          _
        %s371 = smul.u32 2, %s21
        %p372 = scmp.lt.s32.totalorder %s371, 1
        %s373 = scalar_select %p372, %s371, 1
        %s374 = smul.addr %s373, 4
        %s375 = smul.addr %s374, 4
        %s376 = scalar_lea.vmem %s0, %s375
        %p377 = pneg %p50
        %p378 = pneg %p47
        %s379 = smul.u32 2, %s21
        %p380 = scmp.lt.s32.totalorder %s379, 1
        %s381 = scalar_select %p380, %s379, 1
        %s382 = smul.addr %s381, 4
        %s383 = smul.addr %s382, 4
        %s384 = scalar_lea.vmem %s1, %s383
        %p385 = pneg %p76
        %p386 = pneg %p73
        %p387 = pneg %p97
        %p388 = pneg %p94
        %p389 = pneg %p118
        %p390 = pneg %p115
        %s391 = sand.u32 %s131, 1
        %s392 = sand.u32 %s131, 1
        %s393 = smul.addr %s392, 64
        %s394 = scalar_lea.vmem [#allocation3], %s393
        %p395 = pneg %p144
        %p396 = pneg %p141
        %p397 = scmp.lt.s32.totalorder %s22, 2
        %s398 = scalar_select %p397, %s22, 2
        %s399 = scalar_lea.vmem %s5, %s398
        %p400 = pneg %p170
        %p401 = pneg %p167
        %p402 = pneg %p198
        %p403 = pneg %p195
        %s404 = sand.u32 %s185, 1
        %s405 = sand.u32 %s185, 1
        %s406 = smul.addr %s405, 256
        %s407 = scalar_lea.vmem [#allocation4], %s406
        %s408 = smul.u32 2, %s21
        %p409 = scmp.lt.s32.totalorder %s408, 1
        %s410 = scalar_select %p409, %s408, 1
        %s411 = smul.addr %s410, 4
        %s412 = smul.addr %s411, 4
        %s413 = scalar_lea.vmem %s0, %s412
        %s414 = smul.u32 2, %s21
        %s415 = smul.u32 2, %s21
        %p416 = scmp.lt.s32.totalorder %s415, 1
        %s417 = scalar_select %p416, %s415, 1
        %s418 = smul.addr %s417, 4
        %s419 = smul.addr %s418, 4
        %s420 = scalar_lea.vmem %s1, %s419
        %s421 = smul.u32 2, %s21
        %p422 = scmp.lt.s32.totalorder %s22, 2
        %s423 = scalar_select %p422, %s22, 2
        %s424 = scalar_lea.vmem %s5, %s423
        %s425 = smul.u32 2, %s21
        %p427 = scmp.eq.s32.totalorder %s22, 0
        // Predicated region
        $region86: #{parallel_attention.1} parent=80 // pred_check
          %p428 = pneg %p427
        $region87: #{parallel_attention.1} parent=80 // pred_check_branch
          %430 = sbr.rel (%p428) target = $region89
        $region88: #{parallel_attention.1} parent=80 // pred_region
          %v431 = vld [vmem:[%s420] sm:$0xf]
          %v432 = vld [vmem:[%s420 + $0x4] sm:$0xf]
          %v433 = vld [vmem:[%s420 + $0x8] sm:$0xf]
          %v434 = vld [vmem:[%s420 + $0xc] sm:$0xf]
          %v435 = vld [vmem:[%s420 + $0x10] sm:$0xf]
          %v436 = vld [vmem:[%s420 + $0x14] sm:$0xf]
          %v437 = vld [vmem:[%s420 + $0x18] sm:$0xf]
          %v438 = vld [vmem:[%s420 + $0x1c] sm:$0xf]
          %v439 = vld [vmem:[%s2] sm:$0xf]
          %v440 = vld [vmem:[%s2 + $0x4] sm:$0xf]
          %v441 = vld [vmem:[%s2 + $0x8] sm:$0xf]
          %v442 = vld [vmem:[%s2 + $0xc] sm:$0xf]
          %v443 = vld [vmem:[%s2 + $0x10] sm:$0xf]
          %v444 = vld [vmem:[%s2 + $0x14] sm:$0xf]
          %v445 = vld [vmem:[%s2 + $0x18] sm:$0xf]
          %v446 = vld [vmem:[%s2 + $0x1c] sm:$0xf]
          %v447 = vld [vmem:[%s2 + $0x20] sm:$0xf]
          %v448 = vld [vmem:[%s2 + $0x24] sm:$0xf]
          %v449 = vld [vmem:[%s2 + $0x28] sm:$0xf]
          %v450 = vld [vmem:[%s2 + $0x2c] sm:$0xf]
          %v451 = vld [vmem:[%s2 + $0x30] sm:$0xf]
          %v452 = vld [vmem:[%s2 + $0x34] sm:$0xf]
          %v453 = vld [vmem:[%s2 + $0x38] sm:$0xf]
          %v454 = vld [vmem:[%s2 + $0x3c] sm:$0xf]
          %v455 = vld [vmem:[%s3] sm:$0x1]
          %v457 = vlaneseq
          %v458 = vshrl.u32 %v457, 7
          %v459 = vsub.s32 0, %v458
          %v460 = vrot.slane %v455, %v459
          %v470 = vunpack.c.l.b16 %v431
          %v471 = vunpack.c.l.b16 %v432
          %v472 = vunpack.c.l.b16 %v433
          %v473 = vunpack.c.l.b16 %v434
          %v474 = vunpack.c.l.b16 %v435
          %v475 = vunpack.c.l.b16 %v436
          %v476 = vunpack.c.l.b16 %v437
          %v477 = vunpack.c.l.b16 %v438
          %v478 = vpack.c.b16 %v471, %v470
          %v479 = vpack.c.b16 %v473, %v472
          %v480 = vpack.c.b16 %v475, %v474
          %v481 = vpack.c.b16 %v477, %v476
          %v502 = vunpack.c.l.b16 %v439
          %v503 = vunpack.c.l.b16 %v440
          %v504 = vunpack.c.l.b16 %v441
          %v505 = vunpack.c.l.b16 %v442
          %v506 = vunpack.c.l.b16 %v443
          %v507 = vunpack.c.l.b16 %v444
          %v508 = vunpack.c.l.b16 %v445
          %v509 = vunpack.c.l.b16 %v446
          %v510 = vunpack.c.l.b16 %v447
          %v511 = vunpack.c.l.b16 %v448
          %v512 = vunpack.c.l.b16 %v449
          %v513 = vunpack.c.l.b16 %v450
          %v514 = vunpack.c.l.b16 %v451
          %v515 = vunpack.c.l.b16 %v452
          %v516 = vunpack.c.l.b16 %v453
          %v517 = vunpack.c.l.b16 %v454
          %v518 = vpack.c.b16 %v503, %v502
          %v519 = vpack.c.b16 %v505, %v504
          %v520 = vpack.c.b16 %v507, %v506
          %v521 = vpack.c.b16 %v509, %v508
          %v522 = vpack.c.b16 %v511, %v510
          %v523 = vpack.c.b16 %v513, %v512
          %v524 = vpack.c.b16 %v515, %v514
          %v525 = vpack.c.b16 %v517, %v516
          %534 = vmatprep.subr.bf16.mxu0 0
          %535 = vmatpush1.bf16.msra.mxu0 %v518
          %536 = vmatprep.subr.bf16.mxu0 0
          %537 = vmatpush1.bf16.msra.mxu0 %v519
          %538 = vmatprep.subr.bf16.mxu0 0
          %539 = vmatpush1.bf16.msra.mxu0 %v520
          %540 = vmatprep.subr.bf16.mxu0 0
          %541 = vmatpush1.bf16.msra.mxu0 %v521
          %542 = vmatprep.subr.bf16.mxu0 0
          %543 = vmatpush1.bf16.msra.mxu0 %v522
          %544 = vmatprep.subr.bf16.mxu0 0
          %545 = vmatpush1.bf16.msra.mxu0 %v523
          %546 = vmatprep.subr.bf16.mxu0 0
          %547 = vmatpush1.bf16.msra.mxu0 %v524
          %548 = vmatprep.subr.bf16.mxu0 0
          %549 = vmatpush1.bf16.msra.mxu0 %v525
          %550 = vmatprep.subr.bf16.mxu0 0
          %551 = vmatpush1.bf16.msra.mxu0 0
          %552 = vmatprep.subr.bf16.mxu0 0
          %553 = vmatpush1.bf16.msra.mxu0 0
          %554 = vmatprep.subr.bf16.mxu0 0
          %555 = vmatpush1.bf16.msra.mxu0 0
          %556 = vmatprep.subr.bf16.mxu0 0
          %557 = vmatpush1.bf16.msra.mxu0 0
          %558 = vmatprep.subr.bf16.mxu0 0
          %559 = vmatpush1.bf16.msra.mxu0 0
          %560 = vmatprep.subr.bf16.mxu0 0
          %561 = vmatpush1.bf16.msra.mxu0 0
          %562 = vmatprep.subr.bf16.mxu0 0
          %563 = vmatpush1.bf16.msra.mxu0 0
          %564 = vmatprep.subr.bf16.mxu0 0
          %565 = vmatpush1.bf16.msra.mxu0 0
          %566 = vmatprep.mubr.bf16.mxu0 0
          %567 = vmatmul.mubr.bf16.gmra.mrb[0].mxu0 %v478
          %v568 = vpop.f32.mrb[0].mxu0
          %v569 = vadd.f32 %v460, %v568
          %v570 = vpop.f32.mrb[0].mxu0
          %v571 = vpop.f32.mrb[0].mxu0
          %v572 = vadd.f32 %v460, %v571
          %v573 = vpop.f32.mrb[0].mxu0
          %574 = vmatprep.mubr.bf16.mxu0 0
          %575 = vmatmul.mubr.bf16.gmra.mrb[0].mxu0 %v479
          %v576 = vpop.f32.mrb[0].mxu0
          %v577 = vadd.f32 %v460, %v576
          %v578 = vpop.f32.mrb[0].mxu0
          %v579 = vpop.f32.mrb[0].mxu0
          %v580 = vadd.f32 %v460, %v579
          %v581 = vpop.f32.mrb[0].mxu0
          %582 = vmatprep.mubr.bf16.mxu0 0
          %583 = vmatmul.mubr.bf16.gmra.mrb[0].mxu0 %v480
          %v584 = vpop.f32.mrb[0].mxu0
          %v585 = vadd.f32 %v460, %v584
          %v586 = vpop.f32.mrb[0].mxu0
          %v587 = vpop.f32.mrb[0].mxu0
          %v588 = vadd.f32 %v460, %v587
          %v589 = vpop.f32.mrb[0].mxu0
          %590 = vmatprep.mubr.bf16.mxu0 0
          %591 = vmatmul.mubr.bf16.gmra.mrb[0].mxu0 %v481
          %v592 = vpop.f32.mrb[0].mxu0
          %v593 = vadd.f32 %v460, %v592
          %v594 = vpop.f32.mrb[0].mxu0
          %v595 = vpop.f32.mrb[0].mxu0
          %v596 = vadd.f32 %v460, %v595
          %v597 = vpop.f32.mrb[0].mxu0
          %598 = vdwg.mxu0
          %v599 = vtanh.pop %v569
          %v600 = vtanh.pop %v572
          %v601 = vtanh.pop %v577
          %v602 = vtanh.pop %v580
          %v603 = vtanh.pop %v585
          %v604 = vtanh.pop %v588
          %v605 = vtanh.pop %v593
          %v606 = vtanh.pop %v596
          %v607 = vpack.c.bf16 %v600, %v599
          %v608 = vpack.c.bf16 %v602, %v601
          %v609 = vpack.c.bf16 %v604, %v603
          %v610 = vpack.c.bf16 %v606, %v605
          %611 = vst [vmem:[#allocation2] sm:$0xff] %v607
          %612 = vst [vmem:[#allocation2 + $0x8] sm:$0xff] %v608
          %613 = vst [vmem:[#allocation2 + $0x10] sm:$0xff] %v609
          %614 = vst [vmem:[#allocation2 + $0x18] sm:$0xff] %v610
        $region89: #{parallel_attention.1} parent=80 // pred_fallthru
          _
        %v615 = vld [vmem:[#allocation2] sm:$0xff]
        %v616 = vld [vmem:[#allocation2 + $0x8] sm:$0xff]
        %v617 = vld [vmem:[#allocation2 + $0x10] sm:$0xff]
        %v618 = vld [vmem:[#allocation2 + $0x18] sm:$0xff]
        %v619 = vld [vmem:[%s367] sm:$0xf]
        %v620 = vld [vmem:[%s367 + $0x4] sm:$0xf]
        %v621 = vld [vmem:[%s367 + $0x8] sm:$0xf]
        %v622 = vld [vmem:[%s367 + $0xc] sm:$0xf]
        %v623 = vld [vmem:[%s367 + $0x10] sm:$0xf]
        %v624 = vld [vmem:[%s367 + $0x14] sm:$0xf]
        %v625 = vld [vmem:[%s367 + $0x18] sm:$0xf]
        %v626 = vld [vmem:[%s367 + $0x1c] sm:$0xf]
        %v627 = vld [vmem:[%s367 + $0x20] sm:$0xf]
        %v628 = vld [vmem:[%s367 + $0x24] sm:$0xf]
        %v629 = vld [vmem:[%s367 + $0x28] sm:$0xf]
        %v630 = vld [vmem:[%s367 + $0x2c] sm:$0xf]
        %v631 = vld [vmem:[%s367 + $0x30] sm:$0xf]
        %v632 = vld [vmem:[%s367 + $0x34] sm:$0xf]
        %v633 = vld [vmem:[%s367 + $0x38] sm:$0xf]
        %v634 = vld [vmem:[%s367 + $0x3c] sm:$0xf]
        %v635 = vld [vmem:[%s424] sm:$0x1]
        %v637 = vlaneseq
        %v638 = vshrl.u32 %v637, 7
        %v639 = vsub.s32 0, %v638
        %v640 = vrot.slane %v635, %v639
        %v658 = vunpack.c.l.b16 %v619
        %v659 = vunpack.c.l.b16 %v620
        %v660 = vunpack.c.l.b16 %v621
        %v661 = vunpack.c.l.b16 %v622
        %v662 = vunpack.c.l.b16 %v623
        %v663 = vunpack.c.l.b16 %v624
        %v664 = vunpack.c.l.b16 %v625
        %v665 = vunpack.c.l.b16 %v626
        %v666 = vunpack.c.l.b16 %v627
        %v667 = vunpack.c.l.b16 %v628
        %v668 = vunpack.c.l.b16 %v629
        %v669 = vunpack.c.l.b16 %v630
        %v670 = vunpack.c.l.b16 %v631
        %v671 = vunpack.c.l.b16 %v632
        %v672 = vunpack.c.l.b16 %v633
        %v673 = vunpack.c.l.b16 %v634
        %v674 = vpack.c.b16 %v659, %v658
        %v675 = vpack.c.b16 %v661, %v660
        %v676 = vpack.c.b16 %v663, %v662
        %v677 = vpack.c.b16 %v665, %v664
        %v678 = vpack.c.b16 %v667, %v666
        %v679 = vpack.c.b16 %v669, %v668
        %v680 = vpack.c.b16 %v671, %v670
        %v681 = vpack.c.b16 %v673, %v672
        %690 = vmatprep.subr.bf16.mxu0 0
        %691 = vmatpush1.bf16.msra.mxu0 %v674
        %692 = vmatprep.subr.bf16.mxu0 0
        %693 = vmatpush1.bf16.msra.mxu0 %v675
        %694 = vmatprep.subr.bf16.mxu0 0
        %695 = vmatpush1.bf16.msra.mxu0 %v676
        %696 = vmatprep.subr.bf16.mxu0 0
        %697 = vmatpush1.bf16.msra.mxu0 %v677
        %698 = vmatprep.subr.bf16.mxu0 0
        %699 = vmatpush1.bf16.msra.mxu0 %v678
        %700 = vmatprep.subr.bf16.mxu0 0
        %701 = vmatpush1.bf16.msra.mxu0 %v679
        %702 = vmatprep.subr.bf16.mxu0 0
        %703 = vmatpush1.bf16.msra.mxu0 %v680
        %704 = vmatprep.subr.bf16.mxu0 0
        %705 = vmatpush1.bf16.msra.mxu0 %v681
        %706 = vmatprep.subr.bf16.mxu0 0
        %707 = vmatpush1.bf16.msra.mxu0 0
        %708 = vmatprep.subr.bf16.mxu0 0
        %709 = vmatpush1.bf16.msra.mxu0 0
        %710 = vmatprep.subr.bf16.mxu0 0
        %711 = vmatpush1.bf16.msra.mxu0 0
        %712 = vmatprep.subr.bf16.mxu0 0
        %713 = vmatpush1.bf16.msra.mxu0 0
        %714 = vmatprep.subr.bf16.mxu0 0
        %715 = vmatpush1.bf16.msra.mxu0 0
        %716 = vmatprep.subr.bf16.mxu0 0
        %717 = vmatpush1.bf16.msra.mxu0 0
        %718 = vmatprep.subr.bf16.mxu0 0
        %719 = vmatpush1.bf16.msra.mxu0 0
        %720 = vmatprep.subr.bf16.mxu0 0
        %721 = vmatpush1.bf16.msra.mxu0 0
        %722 = vmatprep.mubr.bf16.mxu0 0
        %723 = vmatmul.mubr.bf16.gmra.mrb[0].mxu0 %v615
        %v724 = vpop.f32.mrb[0].mxu0
        %v725 = vadd.f32 %v640, %v724
        %v726 = vpop.f32.mrb[0].mxu0
        %v727 = vpop.f32.mrb[0].mxu0
        %v728 = vadd.f32 %v640, %v727
        %v729 = vpop.f32.mrb[0].mxu0
        %730 = vmatprep.mubr.bf16.mxu0 0
        %731 = vmatmul.mubr.bf16.gmra.mrb[0].mxu0 %v616
        %v732 = vpop.f32.mrb[0].mxu0
        %v733 = vadd.f32 %v640, %v732
        %v734 = vpop.f32.mrb[0].mxu0
        %v735 = vpop.f32.mrb[0].mxu0
        %v736 = vadd.f32 %v640, %v735
        %v737 = vpop.f32.mrb[0].mxu0
        %738 = vmatprep.mubr.bf16.mxu0 0
        %739 = vmatmul.mubr.bf16.gmra.mrb[0].mxu0 %v617
        %v740 = vpop.f32.mrb[0].mxu0
        %v741 = vadd.f32 %v640, %v740
        %v742 = vpop.f32.mrb[0].mxu0
        %v743 = vpop.f32.mrb[0].mxu0
        %v744 = vadd.f32 %v640, %v743
        %v745 = vpop.f32.mrb[0].mxu0
        %746 = vmatprep.mubr.bf16.mxu0 0
        %747 = vmatmul.mubr.bf16.gmra.mrb[0].mxu0 %v618
        %v748 = vpop.f32.mrb[0].mxu0
        %v749 = vadd.f32 %v640, %v748
        %v750 = vpop.f32.mrb[0].mxu0
        %v751 = vpop.f32.mrb[0].mxu0
        %v752 = vadd.f32 %v640, %v751
        %v753 = vpop.f32.mrb[0].mxu0
        %754 = vdwg.mxu0
        %v755 = vmax.f32 %v725, %v728
        %v756 = vmax.f32 %v733, %v736
        %v757 = vmax.f32 %v755, %v756
        %v758 = vrot.slane %v757, 4
        %v759 = vmax.f32 %v757, %v758
        %v760 = vrot.slane %v759, 2
        %v761 = vmax.f32 %v759, %v760
        %v762 = vrot.slane %v761, 1
        %v763 = vmax.f32 %v761, %v762
        %v764 = vsub.f32 %v725, %v763
        %v765 = vsub.f32 %v728, %v763
        %v766 = vsub.f32 %v733, %v763
        %v767 = vsub.f32 %v736, %v763
        %v768 = vmul.f32 %v764, 1.442695
        %v769 = vpow.pop %v768
        %v770 = vmul.f32 %v765, 1.442695
        %v771 = vpow.pop %v770
        %v772 = vmul.f32 %v766, 1.442695
        %v773 = vpow.pop %v772
        %v774 = vmul.f32 %v767, 1.442695
        %v775 = vpow.pop %v774
        %v776 = vadd.f32 %v769, %v771
        %v777 = vadd.f32 %v776, %v773
        %v778 = vadd.f32 %v777, %v775
        %v779 = vrot.slane %v778, 4
        %v780 = vadd.f32 %v778, %v779
        %v781 = vrot.slane %v780, 2
        %v782 = vadd.f32 %v780, %v781
        %v783 = vrot.slane %v782, 1
        %v784 = vadd.f32 %v782, %v783
        %v785 = vrcp.pop %v784
        %v786 = vmul.f32 %v769, %v785
        %v787 = vmul.f32 %v771, %v785
        %v788 = vmul.f32 %v773, %v785
        %v789 = vmul.f32 %v775, %v785
        %v790 = vpack.c.bf16 %v787, %v786
        %v791 = vpack.c.bf16 %v789, %v788
        %v792 = vld [vmem:[%s413] sm:$0xf]
        %v793 = vld [vmem:[%s413 + $0x4] sm:$0xf]
        %v794 = vld [vmem:[%s413 + $0x8] sm:$0xf]
        %v795 = vld [vmem:[%s413 + $0xc] sm:$0xf]
        %v800 = vunpack.c.l.b16 %v792
        %v801 = vunpack.c.l.b16 %v793
        %v802 = vunpack.c.l.b16 %v794
        %v803 = vunpack.c.l.b16 %v795
        %v804 = vpack.c.b16 %v801, %v800
        %v805 = vpack.c.b16 %v803, %v802
        %808 = vxpose.xlu0.c.b16.start [1/8] %v804, 128
        %809 = vxpose.xlu0.c.b16.cont [2/8] %v805, 128
        %810 = vxpose.xlu0.c.b16.cont [3/8] 0, 128
        %811 = vxpose.xlu0.c.b16.cont [4/8] 0, 128
        %812 = vxpose.xlu0.c.b16.cont [5/8] 0, 128
        %813 = vxpose.xlu0.c.b16.cont [6/8] 0, 128
        %814 = vxpose.xlu0.c.b16.cont [7/8] 0, 128
        %815 = vxpose.xlu0.c.b16.end [8/8] 0, 128
        %v816 = vpop.trf.xlu0
        %v817 = vpop.trf.xlu0
        %v818 = vpop.trf.xlu0
        %v819 = vpop.trf.xlu0
        %v820 = vpop.trf.xlu0
        %v821 = vpop.trf.xlu0
        %v822 = vpop.trf.xlu0
        %v823 = vpop.trf.xlu0
        %vm824 = vcmask 261120
        %v826 = vsel %vm824, %v816, 0
        %v829 = vsel %vm824, %v817, 0
        %v832 = vsel %vm824, %v818, 0
        %v835 = vsel %vm824, %v819, 0
        %v838 = vsel %vm824, %v820, 0
        %v841 = vsel %vm824, %v821, 0
        %v844 = vsel %vm824, %v822, 0
        %v847 = vsel %vm824, %v823, 0
        %849 = vmatprep.subr.bf16.mxu0 0
        %850 = vmatpush1.bf16.msra.mxu0 %v790
        %851 = vmatprep.subr.bf16.mxu0 0
        %852 = vmatpush1.bf16.msra.mxu0 %v791
        %853 = vmatprep.subr.bf16.mxu0 0
        %854 = vmatpush1.bf16.msra.mxu0 0
        %855 = vmatprep.subr.bf16.mxu0 0
        %856 = vmatpush1.bf16.msra.mxu0 0
        %857 = vmatprep.subr.bf16.mxu0 0
        %858 = vmatpush1.bf16.msra.mxu0 0
        %859 = vmatprep.subr.bf16.mxu0 0
        %860 = vmatpush1.bf16.msra.mxu0 0
        %861 = vmatprep.subr.bf16.mxu0 0
        %862 = vmatpush1.bf16.msra.mxu0 0
        %863 = vmatprep.subr.bf16.mxu0 0
        %864 = vmatpush1.bf16.msra.mxu0 0
        %865 = vmatprep.subr.bf16.mxu0 0
        %866 = vmatpush1.bf16.msra.mxu0 0
        %867 = vmatprep.subr.bf16.mxu0 0
        %868 = vmatpush1.bf16.msra.mxu0 0
        %869 = vmatprep.subr.bf16.mxu0 0
        %870 = vmatpush1.bf16.msra.mxu0 0
        %871 = vmatprep.subr.bf16.mxu0 0
        %872 = vmatpush1.bf16.msra.mxu0 0
        %873 = vmatprep.subr.bf16.mxu0 0
        %874 = vmatpush1.bf16.msra.mxu0 0
        %875 = vmatprep.subr.bf16.mxu0 0
        %876 = vmatpush1.bf16.msra.mxu0 0
        %877 = vmatprep.subr.bf16.mxu0 0
        %878 = vmatpush1.bf16.msra.mxu0 0
        %879 = vmatprep.subr.bf16.mxu0 0
        %880 = vmatpush1.bf16.msra.mxu0 0
        %881 = vmatprep.mubr.bf16.mxu0 0
        %882 = vmatmul.mubr.bf16.gmra.mrb[0].mxu0 %v826
        %v883 = vpop.f32.mrb[0].mxu0
        %v884 = vadd.f32 0.0, %v883
        %v885 = vpop.f32.mrb[0].mxu0
        %v886 = vpop.f32.mrb[0].mxu0
        %v887 = vadd.f32 0.0, %v886
        %v888 = vpop.f32.mrb[0].mxu0
        %889 = vmatprep.mubr.bf16.mxu0 0
        %890 = vmatmul.mubr.bf16.gmra.mrb[0].mxu0 %v829
        %v891 = vpop.f32.mrb[0].mxu0
        %v892 = vadd.f32 0.0, %v891
        %v893 = vpop.f32.mrb[0].mxu0
        %v894 = vpop.f32.mrb[0].mxu0
        %v895 = vadd.f32 0.0, %v894
        %v896 = vpop.f32.mrb[0].mxu0
        %897 = vmatprep.mubr.bf16.mxu0 0
        %898 = vmatmul.mubr.bf16.gmra.mrb[0].mxu0 %v832
        %v899 = vpop.f32.mrb[0].mxu0
        %v900 = vadd.f32 0.0, %v899
        %v901 = vpop.f32.mrb[0].mxu0
        %v902 = vpop.f32.mrb[0].mxu0
        %v903 = vadd.f32 0.0, %v902
        %v904 = vpop.f32.mrb[0].mxu0
        %905 = vmatprep.mubr.bf16.mxu0 0
        %906 = vmatmul.mubr.bf16.gmra.mrb[0].mxu0 %v835
        %v907 = vpop.f32.mrb[0].mxu0
        %v908 = vadd.f32 0.0, %v907
        %v909 = vpop.f32.mrb[0].mxu0
        %v910 = vpop.f32.mrb[0].mxu0
        %v911 = vadd.f32 0.0, %v910
        %v912 = vpop.f32.mrb[0].mxu0
        %913 = vmatprep.mubr.bf16.mxu0 0
        %914 = vmatmul.mubr.bf16.gmra.mrb[0].mxu0 %v838
        %v915 = vpop.f32.mrb[0].mxu0
        %v916 = vadd.f32 0.0, %v915
        %v917 = vpop.f32.mrb[0].mxu0
        %v918 = vpop.f32.mrb[0].mxu0
        %v919 = vadd.f32 0.0, %v918
        %v920 = vpop.f32.mrb[0].mxu0
        %921 = vmatprep.mubr.bf16.mxu0 0
        %922 = vmatmul.mubr.bf16.gmra.mrb[0].mxu0 %v841
        %v923 = vpop.f32.mrb[0].mxu0
        %v924 = vadd.f32 0.0, %v923
        %v925 = vpop.f32.mrb[0].mxu0
        %v926 = vpop.f32.mrb[0].mxu0
        %v927 = vadd.f32 0.0, %v926
        %v928 = vpop.f32.mrb[0].mxu0
        %929 = vmatprep.mubr.bf16.mxu0 0
        %930 = vmatmul.mubr.bf16.gmra.mrb[0].mxu0 %v844
        %v931 = vpop.f32.mrb[0].mxu0
        %v932 = vadd.f32 0.0, %v931
        %v933 = vpop.f32.mrb[0].mxu0
        %v934 = vpop.f32.mrb[0].mxu0
        %v935 = vadd.f32 0.0, %v934
        %v936 = vpop.f32.mrb[0].mxu0
        %937 = vmatprep.mubr.bf16.mxu0 0
        %938 = vmatmul.mubr.bf16.gmra.mrb[0].mxu0 %v847
        %v939 = vpop.f32.mrb[0].mxu0
        %v940 = vadd.f32 0.0, %v939
        %v941 = vpop.f32.mrb[0].mxu0
        %v942 = vpop.f32.mrb[0].mxu0
        %v943 = vadd.f32 0.0, %v942
        %v944 = vpop.f32.mrb[0].mxu0
        %945 = vdwg.mxu0
        %946 = vst [vmem:[%s407] sm:$0xff] %v884
        %947 = vst [vmem:[%s407 + $0x8] sm:$0xff] %v887
        %948 = vst [vmem:[%s407 + $0x10] sm:$0xff] %v892
        %949 = vst [vmem:[%s407 + $0x18] sm:$0xff] %v895
        %950 = vst [vmem:[%s407 + $0x20] sm:$0xff] %v900
        %951 = vst [vmem:[%s407 + $0x28] sm:$0xff] %v903
        %952 = vst [vmem:[%s407 + $0x30] sm:$0xff] %v908
        %953 = vst [vmem:[%s407 + $0x38] sm:$0xff] %v911
        %954 = vst [vmem:[%s407 + $0x40] sm:$0xff] %v916
        %955 = vst [vmem:[%s407 + $0x48] sm:$0xff] %v919
        %956 = vst [vmem:[%s407 + $0x50] sm:$0xff] %v924
        %957 = vst [vmem:[%s407 + $0x58] sm:$0xff] %v927
        %958 = vst [vmem:[%s407 + $0x60] sm:$0xff] %v932
        %959 = vst [vmem:[%s407 + $0x68] sm:$0xff] %v935
        %960 = vst [vmem:[%s407 + $0x70] sm:$0xff] %v940
        %961 = vst [vmem:[%s407 + $0x78] sm:$0xff] %v943
        %v962 = vmax.f32 %v741, %v744
        %v963 = vmax.f32 %v749, %v752
        %v964 = vmax.f32 %v962, %v963
        %v965 = vrot.slane %v964, 4
        %v966 = vmax.f32 %v964, %v965
        %v967 = vrot.slane %v966, 2
        %v968 = vmax.f32 %v966, %v967
        %v969 = vrot.slane %v968, 1
        %v970 = vmax.f32 %v968, %v969
        %v971 = vsub.f32 %v741, %v970
        %v972 = vsub.f32 %v744, %v970
        %v973 = vsub.f32 %v749, %v970
        %v974 = vsub.f32 %v752, %v970
        %v975 = vmul.f32 %v971, 1.442695
        %v976 = vpow.pop %v975
        %v977 = vmul.f32 %v972, 1.442695
        %v978 = vpow.pop %v977
        %v979 = vmul.f32 %v973, 1.442695
        %v980 = vpow.pop %v979
        %v981 = vmul.f32 %v974, 1.442695
        %v982 = vpow.pop %v981
        %v983 = vadd.f32 %v976, %v978
        %v984 = vadd.f32 %v983, %v980
        %v985 = vadd.f32 %v984, %v982
        %v986 = vrot.slane %v985, 4
        %v987 = vadd.f32 %v985, %v986
        %v988 = vrot.slane %v987, 2
        %v989 = vadd.f32 %v987, %v988
        %v990 = vrot.slane %v989, 1
        %v991 = vadd.f32 %v989, %v990
        %v992 = vrcp.pop %v991
        %v993 = vmul.f32 %v976, %v992
        %v994 = vmul.f32 %v978, %v992
        %v995 = vmul.f32 %v980, %v992
        %v996 = vmul.f32 %v982, %v992
        %v997 = vpack.c.bf16 %v994, %v993
        %v998 = vpack.c.bf16 %v996, %v995
        %s999 = scalar_lea.vmem %s413, 16
        %v1000 = vld [vmem:[%s999] sm:$0xf]
        %v1001 = vld [vmem:[%s999 + $0x4] sm:$0xf]
        %v1002 = vld [vmem:[%s999 + $0x8] sm:$0xf]
        %v1003 = vld [vmem:[%s999 + $0xc] sm:$0xf]
        %v1008 = vunpack.c.l.b16 %v1000
        %v1009 = vunpack.c.l.b16 %v1001
        %v1010 = vunpack.c.l.b16 %v1002
        %v1011 = vunpack.c.l.b16 %v1003
        %v1012 = vpack.c.b16 %v1009, %v1008
        %v1013 = vpack.c.b16 %v1011, %v1010
        %1016 = vxpose.xlu0.c.b16.start [1/8] %v1012, 128
        %1017 = vxpose.xlu0.c.b16.cont [2/8] %v1013, 128
        %1018 = vxpose.xlu0.c.b16.cont [3/8] 0, 128
        %1019 = vxpose.xlu0.c.b16.cont [4/8] 0, 128
        %1020 = vxpose.xlu0.c.b16.cont [5/8] 0, 128
        %1021 = vxpose.xlu0.c.b16.cont [6/8] 0, 128
        %1022 = vxpose.xlu0.c.b16.cont [7/8] 0, 128
        %1023 = vxpose.xlu0.c.b16.end [8/8] 0, 128
        %v1024 = vpop.trf.xlu0
        %v1025 = vpop.trf.xlu0
        %v1026 = vpop.trf.xlu0
        %v1027 = vpop.trf.xlu0
        %v1028 = vpop.trf.xlu0
        %v1029 = vpop.trf.xlu0
        %v1030 = vpop.trf.xlu0
        %v1031 = vpop.trf.xlu0
        %v1033 = vsel %vm824, %v1024, 0
        %v1036 = vsel %vm824, %v1025, 0
        %v1039 = vsel %vm824, %v1026, 0
        %v1042 = vsel %vm824, %v1027, 0
        %v1045 = vsel %vm824, %v1028, 0
        %v1048 = vsel %vm824, %v1029, 0
        %v1051 = vsel %vm824, %v1030, 0
        %v1054 = vsel %vm824, %v1031, 0
        %1056 = vmatprep.subr.bf16.mxu0 0
        %1057 = vmatpush1.bf16.msra.mxu0 %v997
        %1058 = vmatprep.subr.bf16.mxu0 0
        %1059 = vmatpush1.bf16.msra.mxu0 %v998
        %1060 = vmatprep.subr.bf16.mxu0 0
        %1061 = vmatpush1.bf16.msra.mxu0 0
        %1062 = vmatprep.subr.bf16.mxu0 0
        %1063 = vmatpush1.bf16.msra.mxu0 0
        %1064 = vmatprep.subr.bf16.mxu0 0
        %1065 = vmatpush1.bf16.msra.mxu0 0
        %1066 = vmatprep.subr.bf16.mxu0 0
        %1067 = vmatpush1.bf16.msra.mxu0 0
        %1068 = vmatprep.subr.bf16.mxu0 0
        %1069 = vmatpush1.bf16.msra.mxu0 0
        %1070 = vmatprep.subr.bf16.mxu0 0
        %1071 = vmatpush1.bf16.msra.mxu0 0
        %1072 = vmatprep.subr.bf16.mxu0 0
        %1073 = vmatpush1.bf16.msra.mxu0 0
        %1074 = vmatprep.subr.bf16.mxu0 0
        %1075 = vmatpush1.bf16.msra.mxu0 0
        %1076 = vmatprep.subr.bf16.mxu0 0
        %1077 = vmatpush1.bf16.msra.mxu0 0
        %1078 = vmatprep.subr.bf16.mxu0 0
        %1079 = vmatpush1.bf16.msra.mxu0 0
        %1080 = vmatprep.subr.bf16.mxu0 0
        %1081 = vmatpush1.bf16.msra.mxu0 0
        %1082 = vmatprep.subr.bf16.mxu0 0
        %1083 = vmatpush1.bf16.msra.mxu0 0
        %1084 = vmatprep.subr.bf16.mxu0 0
        %1085 = vmatpush1.bf16.msra.mxu0 0
        %1086 = vmatprep.subr.bf16.mxu0 0
        %1087 = vmatpush1.bf16.msra.mxu0 0
        %1088 = vmatprep.mubr.bf16.mxu0 0
        %1089 = vmatmul.mubr.bf16.gmra.mrb[0].mxu0 %v1033
        %v1090 = vpop.f32.mrb[0].mxu0
        %v1091 = vadd.f32 0.0, %v1090
        %v1092 = vpop.f32.mrb[0].mxu0
        %v1093 = vpop.f32.mrb[0].mxu0
        %v1094 = vadd.f32 0.0, %v1093
        %v1095 = vpop.f32.mrb[0].mxu0
        %1096 = vmatprep.mubr.bf16.mxu0 0
        %1097 = vmatmul.mubr.bf16.gmra.mrb[0].mxu0 %v1036
        %v1098 = vpop.f32.mrb[0].mxu0
        %v1099 = vadd.f32 0.0, %v1098
        %v1100 = vpop.f32.mrb[0].mxu0
        %v1101 = vpop.f32.mrb[0].mxu0
        %v1102 = vadd.f32 0.0, %v1101
        %v1103 = vpop.f32.mrb[0].mxu0
        %1104 = vmatprep.mubr.bf16.mxu0 0
        %1105 = vmatmul.mubr.bf16.gmra.mrb[0].mxu0 %v1039
        %v1106 = vpop.f32.mrb[0].mxu0
        %v1107 = vadd.f32 0.0, %v1106
        %v1108 = vpop.f32.mrb[0].mxu0
        %v1109 = vpop.f32.mrb[0].mxu0
        %v1110 = vadd.f32 0.0, %v1109
        %v1111 = vpop.f32.mrb[0].mxu0
        %1112 = vmatprep.mubr.bf16.mxu0 0
        %1113 = vmatmul.mubr.bf16.gmra.mrb[0].mxu0 %v1042
        %v1114 = vpop.f32.mrb[0].mxu0
        %v1115 = vadd.f32 0.0, %v1114
        %v1116 = vpop.f32.mrb[0].mxu0
        %v1117 = vpop.f32.mrb[0].mxu0
        %v1118 = vadd.f32 0.0, %v1117
        %v1119 = vpop.f32.mrb[0].mxu0
        %1120 = vmatprep.mubr.bf16.mxu0 0
        %1121 = vmatmul.mubr.bf16.gmra.mrb[0].mxu0 %v1045
        %v1122 = vpop.f32.mrb[0].mxu0
        %v1123 = vadd.f32 0.0, %v1122
        %v1124 = vpop.f32.mrb[0].mxu0
        %v1125 = vpop.f32.mrb[0].mxu0
        %v1126 = vadd.f32 0.0, %v1125
        %v1127 = vpop.f32.mrb[0].mxu0
        %1128 = vmatprep.mubr.bf16.mxu0 0
        %1129 = vmatmul.mubr.bf16.gmra.mrb[0].mxu0 %v1048
        %v1130 = vpop.f32.mrb[0].mxu0
        %v1131 = vadd.f32 0.0, %v1130
        %v1132 = vpop.f32.mrb[0].mxu0
        %v1133 = vpop.f32.mrb[0].mxu0
        %v1134 = vadd.f32 0.0, %v1133
        %v1135 = vpop.f32.mrb[0].mxu0
        %1136 = vmatprep.mubr.bf16.mxu0 0
        %1137 = vmatmul.mubr.bf16.gmra.mrb[0].mxu0 %v1051
        %v1138 = vpop.f32.mrb[0].mxu0
        %v1139 = vadd.f32 0.0, %v1138
        %v1140 = vpop.f32.mrb[0].mxu0
        %v1141 = vpop.f32.mrb[0].mxu0
        %v1142 = vadd.f32 0.0, %v1141
        %v1143 = vpop.f32.mrb[0].mxu0
        %1144 = vmatprep.mubr.bf16.mxu0 0
        %1145 = vmatmul.mubr.bf16.gmra.mrb[0].mxu0 %v1054
        %v1146 = vpop.f32.mrb[0].mxu0
        %v1147 = vadd.f32 0.0, %v1146
        %v1148 = vpop.f32.mrb[0].mxu0
        %v1149 = vpop.f32.mrb[0].mxu0
        %v1150 = vadd.f32 0.0, %v1149
        %v1151 = vpop.f32.mrb[0].mxu0
        %1152 = vdwg.mxu0
        %s1153 = scalar_lea.vmem %s407, 128 [#allocation4]
        %1154 = vst [vmem:[%s1153] sm:$0xff] %v1091
        %1155 = vst [vmem:[%s1153 + $0x8] sm:$0xff] %v1094
        %1156 = vst [vmem:[%s1153 + $0x10] sm:$0xff] %v1099
        %1157 = vst [vmem:[%s1153 + $0x18] sm:$0xff] %v1102
        %1158 = vst [vmem:[%s1153 + $0x20] sm:$0xff] %v1107
        %1159 = vst [vmem:[%s1153 + $0x28] sm:$0xff] %v1110
        %1160 = vst [vmem:[%s1153 + $0x30] sm:$0xff] %v1115
        %1161 = vst [vmem:[%s1153 + $0x38] sm:$0xff] %v1118
        %1162 = vst [vmem:[%s1153 + $0x40] sm:$0xff] %v1123
        %1163 = vst [vmem:[%s1153 + $0x48] sm:$0xff] %v1126
        %1164 = vst [vmem:[%s1153 + $0x50] sm:$0xff] %v1131
        %1165 = vst [vmem:[%s1153 + $0x58] sm:$0xff] %v1134
        %1166 = vst [vmem:[%s1153 + $0x60] sm:$0xff] %v1139
        %1167 = vst [vmem:[%s1153 + $0x68] sm:$0xff] %v1142
        %1168 = vst [vmem:[%s1153 + $0x70] sm:$0xff] %v1147
        %1169 = vst [vmem:[%s1153 + $0x78] sm:$0xff] %v1150
        %s1170 = sand.u32 %s185, 1
        %s1171 = sand.u32 %s185, 1
        %s1172 = smul.addr %s1171, 256
        %s1173 = scalar_lea.vmem [#allocation4], %s1172
        // Predicated region
        $region90: #{parallel_attention.1} parent=80 // pred_check
          %p1174 = pneg %p195
        $region91: #{parallel_attention.1} parent=80 // pred_check_branch
          %1176 = sbr.rel (%p1174) target = $region93
        $region92: #{parallel_attention.1} parent=80 // pred_region
          %s1177 = smul.u32 2, %s21
          %s1178 = smul.addr %s1177, 48
          %s1179 = sadd.s32 %s22, %s1178
          %s1180 = smul.addr %s1179, 8
          %s1181 = scalar_lea.vmem %s6, %s1180
          // Predicated region
          $region94: #{parallel_attention.1} parent=92 // pred_check
            _
          $region95: #{parallel_attention.1} parent=92 // pred_check_branch
            %1183 = sbr.rel (0) target = $region97
          $region96: #{parallel_attention.1} parent=92 // pred_region
            // Predicated region
            $region98: #{parallel_attention.1} parent=96 // pred_check
              _
            $region99: #{parallel_attention.1} parent=96 // pred_check_branch
              %1185 = sbr.rel (0) target = $region101
            $region100: #{parallel_attention.1} parent=96 // pred_region
              // Predicated region
              $region113: #{parallel_attention.1} parent=100 // pred_check
                _
              $region114: #{parallel_attention.1} parent=100 // pred_check_branch
                %1262 = sbr.rel (0) target = $region116
              $region115: #{parallel_attention.1} parent=100 // pred_region
                loop: start=0, step=1, limit=1
                $region117: #{parallel_attention.1} parent=115 // loop_pre_header
                  _
                $region118: #{parallel_attention.1} parent=115 // loop_header
                  %s1264 = sphi 0, %s1268
                  %p1265 = scmp.ge.s32.totalorder %s1264, 1
                  %s1269 = sphi %s1173, %s1173
                  %s1270 = sphi %s1181, %s1181
                $region119: #{parallel_attention.1} parent=115 // loop_header_branch
                  %1267 = sbr.rel (%p1265) target = $region123
                $region120: #{parallel_attention.1} parent=115 // loop_body
                  %v1271 = vld [vmem:[%s1269] sm:$0xff]
                  %1272 = vst [vmem:[%s1270] sm:$0xff] %v1271
                  %v1273 = vld [vmem:[%s1269 + $0x8] sm:$0xff]
                  %1274 = vst [vmem:[%s1270 + $0x18] sm:$0xff] %v1273
                  %v1275 = vld [vmem:[%s1269 + $0x10] sm:$0xff]
                  %1276 = vst [vmem:[%s1270 + $0x30] sm:$0xff] %v1275
                  %v1277 = vld [vmem:[%s1269 + $0x18] sm:$0xff]
                  %1278 = vst [vmem:[%s1270 + $0x48] sm:$0xff] %v1277
                  %v1279 = vld [vmem:[%s1269 + $0x20] sm:$0xff]
                  %1280 = vst [vmem:[%s1270 + $0x60] sm:$0xff] %v1279
                  %v1281 = vld [vmem:[%s1269 + $0x28] sm:$0xff]
                  %1282 = vst [vmem:[%s1270 + $0x78] sm:$0xff] %v1281
                  %v1283 = vld [vmem:[%s1269 + $0x30] sm:$0xff]
                  %1284 = vst [vmem:[%s1270 + $0x90] sm:$0xff] %v1283
                  %v1285 = vld [vmem:[%s1269 + $0x38] sm:$0xff]
                  %1286 = vst [vmem:[%s1270 + $0xa8] sm:$0xff] %v1285
                  %v1287 = vld [vmem:[%s1269 + $0x40] sm:$0xff]
                  %1288 = vst [vmem:[%s1270 + $0xc0] sm:$0xff] %v1287
                  %v1289 = vld [vmem:[%s1269 + $0x48] sm:$0xff]
                  %1290 = vst [vmem:[%s1270 + $0xd8] sm:$0xff] %v1289
                  %v1291 = vld [vmem:[%s1269 + $0x50] sm:$0xff]
                  %1292 = vst [vmem:[%s1270 + $0xf0] sm:$0xff] %v1291
                  %v1293 = vld [vmem:[%s1269 + $0x58] sm:$0xff]
                  %1294 = vst [vmem:[%s1270 + $0x108] sm:$0xff] %v1293
                  %v1295 = vld [vmem:[%s1269 + $0x60] sm:$0xff]
                  %1296 = vst [vmem:[%s1270 + $0x120] sm:$0xff] %v1295
                  %v1297 = vld [vmem:[%s1269 + $0x68] sm:$0xff]
                  %1298 = vst [vmem:[%s1270 + $0x138] sm:$0xff] %v1297
                  %v1299 = vld [vmem:[%s1269 + $0x70] sm:$0xff]
                  %1300 = vst [vmem:[%s1270 + $0x150] sm:$0xff] %v1299
                  %v1301 = vld [vmem:[%s1269 + $0x78] sm:$0xff]
                  %1302 = vst [vmem:[%s1270 + $0x168] sm:$0xff] %v1301
                  %v1303 = vld [vmem:[%s1269 + $0x80] sm:$0xff]
                  %1304 = vst [vmem:[%s1270 + $0x180] sm:$0xff] %v1303
                  %v1305 = vld [vmem:[%s1269 + $0x88] sm:$0xff]
                  %1306 = vst [vmem:[%s1270 + $0x198] sm:$0xff] %v1305
                  %v1307 = vld [vmem:[%s1269 + $0x90] sm:$0xff]
                  %1308 = vst [vmem:[%s1270 + $0x1b0] sm:$0xff] %v1307
                  %v1309 = vld [vmem:[%s1269 + $0x98] sm:$0xff]
                  %1310 = vst [vmem:[%s1270 + $0x1c8] sm:$0xff] %v1309
                  %v1311 = vld [vmem:[%s1269 + $0xa0] sm:$0xff]
                  %1312 = vst [vmem:[%s1270 + $0x1e0] sm:$0xff] %v1311
                  %v1313 = vld [vmem:[%s1269 + $0xa8] sm:$0xff]
                  %1314 = vst [vmem:[%s1270 + $0x1f8] sm:$0xff] %v1313
                  %v1315 = vld [vmem:[%s1269 + $0xb0] sm:$0xff]
                  %1316 = vst [vmem:[%s1270 + $0x210] sm:$0xff] %v1315
                  %v1317 = vld [vmem:[%s1269 + $0xb8] sm:$0xff]
                  %1318 = vst [vmem:[%s1270 + $0x228] sm:$0xff] %v1317
                  %v1319 = vld [vmem:[%s1269 + $0xc0] sm:$0xff]
                  %1320 = vst [vmem:[%s1270 + $0x240] sm:$0xff] %v1319
                  %v1321 = vld [vmem:[%s1269 + $0xc8] sm:$0xff]
                  %1322 = vst [vmem:[%s1270 + $0x258] sm:$0xff] %v1321
                  %v1323 = vld [vmem:[%s1269 + $0xd0] sm:$0xff]
                  %1324 = vst [vmem:[%s1270 + $0x270] sm:$0xff] %v1323
                  %v1325 = vld [vmem:[%s1269 + $0xd8] sm:$0xff]
                  %1326 = vst [vmem:[%s1270 + $0x288] sm:$0xff] %v1325
                  %v1327 = vld [vmem:[%s1269 + $0xe0] sm:$0xff]
                  %1328 = vst [vmem:[%s1270 + $0x2a0] sm:$0xff] %v1327
                  %v1329 = vld [vmem:[%s1269 + $0xe8] sm:$0xff]
                  %1330 = vst [vmem:[%s1270 + $0x2b8] sm:$0xff] %v1329
                  %v1331 = vld [vmem:[%s1269 + $0xf0] sm:$0xff]
                  %1332 = vst [vmem:[%s1270 + $0x2d0] sm:$0xff] %v1331
                  %v1333 = vld [vmem:[%s1269 + $0xf8] sm:$0xff]
                  %1334 = vst [vmem:[%s1270 + $0x2e8] sm:$0xff] %v1333
                $region121: #{parallel_attention.1} parent=115 // loop_footer
                  %s1268 = sadd.s32 1, %s1264
                $region122: #{parallel_attention.1} parent=115 // loop_footer_branch
                  %1263 = sbr.rel target = $region118
                $region123: #{parallel_attention.1} parent=115 // loop_exit
                  _
              $region116: #{parallel_attention.1} parent=100 // pred_fallthru
                _
              // Predicated region
              $region124: #{parallel_attention.1} parent=100 // pred_check
                _
              $region125: #{parallel_attention.1} parent=100 // pred_check_branch
                %1336 = sbr.rel target = $region127
              $region126: #{parallel_attention.1} parent=100 // pred_region
                _
              $region127: #{parallel_attention.1} parent=100 // pred_fallthru
                _
            $region101: #{parallel_attention.1} parent=96 // pred_fallthru
              _
            // Predicated region
            $region102: #{parallel_attention.1} parent=96 // pred_check
              _
            $region103: #{parallel_attention.1} parent=96 // pred_check_branch
              %1187 = sbr.rel target = $region105
            $region104: #{parallel_attention.1} parent=96 // pred_region
              loop: start=0, step=1, limit=1
              $region106: #{parallel_attention.1} parent=104 // loop_pre_header
                _
              $region107: #{parallel_attention.1} parent=104 // loop_header
                %s1190 = sphi 0, %s1194
                %p1191 = scmp.ge.s32.totalorder %s1190, 1
                %s1195 = sphi %s1173, %s1173
                %s1196 = sphi %s1181, %s1181
              $region108: #{parallel_attention.1} parent=104 // loop_header_branch
                %1193 = sbr.rel (%p1191) target = $region112
              $region109: #{parallel_attention.1} parent=104 // loop_body
                %v1197 = vld [vmem:[%s1195] sm:$0xff]
                %1198 = vst [vmem:[%s1196] sm:$0xff] %v1197
                %v1199 = vld [vmem:[%s1195 + $0x8] sm:$0xff]
                %1200 = vst [vmem:[%s1196 + $0x18] sm:$0xff] %v1199
                %v1201 = vld [vmem:[%s1195 + $0x10] sm:$0xff]
                %1202 = vst [vmem:[%s1196 + $0x30] sm:$0xff] %v1201
                %v1203 = vld [vmem:[%s1195 + $0x18] sm:$0xff]
                %1204 = vst [vmem:[%s1196 + $0x48] sm:$0xff] %v1203
                %v1205 = vld [vmem:[%s1195 + $0x20] sm:$0xff]
                %1206 = vst [vmem:[%s1196 + $0x60] sm:$0xff] %v1205
                %v1207 = vld [vmem:[%s1195 + $0x28] sm:$0xff]
                %1208 = vst [vmem:[%s1196 + $0x78] sm:$0xff] %v1207
                %v1209 = vld [vmem:[%s1195 + $0x30] sm:$0xff]
                %1210 = vst [vmem:[%s1196 + $0x90] sm:$0xff] %v1209
                %v1211 = vld [vmem:[%s1195 + $0x38] sm:$0xff]
                %1212 = vst [vmem:[%s1196 + $0xa8] sm:$0xff] %v1211
                %v1213 = vld [vmem:[%s1195 + $0x40] sm:$0xff]
                %1214 = vst [vmem:[%s1196 + $0xc0] sm:$0xff] %v1213
                %v1215 = vld [vmem:[%s1195 + $0x48] sm:$0xff]
                %1216 = vst [vmem:[%s1196 + $0xd8] sm:$0xff] %v1215
                %v1217 = vld [vmem:[%s1195 + $0x50] sm:$0xff]
                %1218 = vst [vmem:[%s1196 + $0xf0] sm:$0xff] %v1217
                %v1219 = vld [vmem:[%s1195 + $0x58] sm:$0xff]
                %1220 = vst [vmem:[%s1196 + $0x108] sm:$0xff] %v1219
                %v1221 = vld [vmem:[%s1195 + $0x60] sm:$0xff]
                %1222 = vst [vmem:[%s1196 + $0x120] sm:$0xff] %v1221
                %v1223 = vld [vmem:[%s1195 + $0x68] sm:$0xff]
                %1224 = vst [vmem:[%s1196 + $0x138] sm:$0xff] %v1223
                %v1225 = vld [vmem:[%s1195 + $0x70] sm:$0xff]
                %1226 = vst [vmem:[%s1196 + $0x150] sm:$0xff] %v1225
                %v1227 = vld [vmem:[%s1195 + $0x78] sm:$0xff]
                %1228 = vst [vmem:[%s1196 + $0x168] sm:$0xff] %v1227
                %v1229 = vld [vmem:[%s1195 + $0x80] sm:$0xff]
                %1230 = vst [vmem:[%s1196 + $0x180] sm:$0xff] %v1229
                %v1231 = vld [vmem:[%s1195 + $0x88] sm:$0xff]
                %1232 = vst [vmem:[%s1196 + $0x198] sm:$0xff] %v1231
                %v1233 = vld [vmem:[%s1195 + $0x90] sm:$0xff]
                %1234 = vst [vmem:[%s1196 + $0x1b0] sm:$0xff] %v1233
                %v1235 = vld [vmem:[%s1195 + $0x98] sm:$0xff]
                %1236 = vst [vmem:[%s1196 + $0x1c8] sm:$0xff] %v1235
                %v1237 = vld [vmem:[%s1195 + $0xa0] sm:$0xff]
                %1238 = vst [vmem:[%s1196 + $0x1e0] sm:$0xff] %v1237
                %v1239 = vld [vmem:[%s1195 + $0xa8] sm:$0xff]
                %1240 = vst [vmem:[%s1196 + $0x1f8] sm:$0xff] %v1239
                %v1241 = vld [vmem:[%s1195 + $0xb0] sm:$0xff]
                %1242 = vst [vmem:[%s1196 + $0x210] sm:$0xff] %v1241
                %v1243 = vld [vmem:[%s1195 + $0xb8] sm:$0xff]
                %1244 = vst [vmem:[%s1196 + $0x228] sm:$0xff] %v1243
                %v1245 = vld [vmem:[%s1195 + $0xc0] sm:$0xff]
                %1246 = vst [vmem:[%s1196 + $0x240] sm:$0xff] %v1245
                %v1247 = vld [vmem:[%s1195 + $0xc8] sm:$0xff]
                %1248 = vst [vmem:[%s1196 + $0x258] sm:$0xff] %v1247
                %v1249 = vld [vmem:[%s1195 + $0xd0] sm:$0xff]
                %1250 = vst [vmem:[%s1196 + $0x270] sm:$0xff] %v1249
                %v1251 = vld [vmem:[%s1195 + $0xd8] sm:$0xff]
                %1252 = vst [vmem:[%s1196 + $0x288] sm:$0xff] %v1251
                %v1253 = vld [vmem:[%s1195 + $0xe0] sm:$0xff]
                %1254 = vst [vmem:[%s1196 + $0x2a0] sm:$0xff] %v1253
                %v1255 = vld [vmem:[%s1195 + $0xe8] sm:$0xff]
                %1256 = vst [vmem:[%s1196 + $0x2b8] sm:$0xff] %v1255
                %v1257 = vld [vmem:[%s1195 + $0xf0] sm:$0xff]
                %1258 = vst [vmem:[%s1196 + $0x2d0] sm:$0xff] %v1257
                %v1259 = vld [vmem:[%s1195 + $0xf8] sm:$0xff]
                %1260 = vst [vmem:[%s1196 + $0x2e8] sm:$0xff] %v1259
              $region110: #{parallel_attention.1} parent=104 // loop_footer
                %s1194 = sadd.s32 1, %s1190
              $region111: #{parallel_attention.1} parent=104 // loop_footer_branch
                %1189 = sbr.rel target = $region107
              $region112: #{parallel_attention.1} parent=104 // loop_exit
                _
            $region105: #{parallel_attention.1} parent=96 // pred_fallthru
              _
          $region97: #{parallel_attention.1} parent=92 // pred_fallthru
            _
          %1337 = vnop
        $region93: #{parallel_attention.1} parent=80 // pred_fallthru
          _
      $region81: #{parallel_attention.1} parent=5 // pred_fallthru
        _
      %p1338 = scmp.le.s32.totalorder 2, %s12
      // Predicated region
      $region128: #{parallel_attention.1} parent=5 // pred_check
        %p1339 = pneg %p1338
      $region129: #{parallel_attention.1} parent=5 // pred_check_branch
        %1341 = sbr.rel (%p1339) target = $region131
      $region130: #{parallel_attention.1} parent=5 // pred_region
        %s1342 = ssub.s32 %s12, 2
        // Predicated region
        $region132: #{parallel_attention.1} parent=130 // pred_check
          %p1343 = pneg %p201
        $region133: #{parallel_attention.1} parent=130 // pred_check_branch
          %1345 = sbr.rel (%p1343) target = $region135
        $region134: #{parallel_attention.1} parent=130 // pred_region
          %s1346 = sand.u32 %s186, 1
          %s1347 = sand.u32 %s186, 1
          %s1348 = smul.addr %s1347, 256
          %s1349 = scalar_lea.vmem [#allocation4], %s1348
        $region135: #{parallel_attention.1} parent=130 // pred_fallthru
          _
      $region131: #{parallel_attention.1} parent=5 // pred_fallthru
        _
    $region6: #{parallel_attention.1} parent=1 // loop_footer
      %s16 = sadd.s32 1, %s12
    $region7: #{parallel_attention.1} parent=1 // loop_footer_branch
      %11 = sbr.rel target = $region3
    $region8: #{parallel_attention.1} parent=1 // loop_exit
      _

</llo_original>
